<compile_context>
chip_gen: v6e
topology: v6e:2x2x1
jax: 0.10.0
libtpu: 0.0.40
codegen_flags: <defaults>
</compile_context>

<pallas_src>
import math

import jax
import jax.numpy as jnp
from jax.experimental import pallas as pl
from jax.experimental.pallas import tpu as pltpu

# ----------------------------- configuration --------------------------------
N = 2                      # batch
H = W = 16                 # image size
HW = H * W                 # pixels per image (256)
P = 8                      # encoder.patch_size
HP = H // P                # patches per column (2)
WP = W // P                # patches per row (2)
T = HP * WP                # patches per image (4)
TT = T + 1                 # + cls token
NT = N * T                 # total patch tokens (8)
MROWS = 16                 # N*TT = 10 padded to a sublane multiple
D = 32                     # embed dim
DH = 4 * D                 # mlp hidden
Q = 16                     # n_cls == number of ab colour bins (synthetic gamut)
PP = P * P                 # pixels per patch, single L channel (64)
SIGMA = 5.0                # SoftEncodeAB gaussian sigma
DECODE_T = 0.38            # AnnealedMeanDecodeQ temperature
LAMBDA = 0.5               # class_rebal_lambda
LN_EPS = 1e-5              # PyTorch nn.LayerNorm default

# ---- packed f32 constants slab layout (CONST_ROWS x 128), offsets static ----
R_BPE, R_BQKV, R_BPROJ, R_BMLP1, R_BMLP2, R_BDEC = 0, 1, 2, 3, 4, 5
R_LN1G, R_LN1B, R_LN2G, R_LN2B = 6, 7, 8, 9
R_CENT = 10                 # 2 rows: a-centers / b-centers along lanes (Q cols)
R_EMB = 16                  # MROWS rows: cls/pos additive term (D cols)
R_MASK = R_EMB + MROWS      # 32: MROWS rows: additive attention mask bias
R_CAB = R_MASK + MROWS      # 48: Q rows; col0 = a center, col1 = b center, col2 = class weight
CONST_ROWS = 64             # R_CAB + Q = 60 padded to a multiple of 8

# ---- packed bf16 weight slab layout (WT_ROWS x 128), offsets static --------
W_PE = 0                    # PP rows,  D cols  (3-channel repeat folded in)
W_QKV = W_PE + PP           # 64:  D rows, 3D cols
W_PROJ = W_QKV + D          # 96:  D rows, D cols
W_MLP1 = W_PROJ + D         # 128: D rows, DH cols
W_MLP2 = W_MLP1 + D         # 160: DH rows, D cols
W_DEC = W_MLP2 + DH         # 288: D rows, Q cols
WT_ROWS = W_DEC + D         # 320 (all offsets multiples of the bf16 16-row tile)

ENC_PAD = 128 - (D + Q + 2)                 # zero-pad columns of the encoder output slab
COLOR_ROWS = ((N * Q + N + 7) // 8) * 8     # 40: q rows + class-weight rows + pad


# ------------------------------ fused Pallas kernel ---------------------------
def fused_segmenter_kernel(patch_ref, consts_ref, wts_ref, ab_ref,
                           enc_out_ref, color_out_ref):
    """Grid step 0: encoder + decoder head + annealed-mean decode (per patch).
       Grid step 1: SoftEncodeAB + GetClassWeights (batched over N)."""
    pid = pl.program_id(0)
    bf16 = jnp.bfloat16

    @pl.when(pid == 0)
    def _encoder_decoder_path():
        def layer_norm(v, g, b):
            mu = jnp.mean(v, axis=-1, keepdims=True)
            var = jnp.mean(jnp.square(v - mu), axis=-1, keepdims=True)
            return (v - mu) * jax.lax.rsqrt(var + LN_EPS) * g + b

        # ---- patch embed (normalize_l fused; cls/pad rows hold 50.0 -> 0 here) ----
        xp = (patch_ref[...] - 50.0) * 0.01                                  # (MROWS, PP)
        emb = jnp.dot(xp.astype(bf16), wts_ref[W_PE:W_PE + PP, 0:D],
                      preferred_element_type=jnp.float32)
        emb = emb + consts_ref[R_BPE:R_BPE + 1, 0:D]
        # additive term: pos (patch rows), cls+pos0-b_pe (cls rows), -b_pe (pad rows)
        x = emb + consts_ref[R_EMB:R_EMB + MROWS, 0:D]                       # (MROWS, D)

        # ---- single-head attention, batch folded via precomputed mask bias ----
        xn = layer_norm(x, consts_ref[R_LN1G:R_LN1G + 1, 0:D],
                        consts_ref[R_LN1B:R_LN1B + 1, 0:D])
        qkv = jnp.dot(xn.astype(bf16), wts_ref[W_QKV:W_QKV + D, 0:3 * D],
                      preferred_element_type=jnp.float32)
        qkv = qkv + consts_ref[R_BQKV:R_BQKV + 1, 0:3 * D]
        q = qkv[:, 0:D]
        k = qkv[:, D:2 * D]
        v = qkv[:, 2 * D:3 * D]
        scores = jax.lax.dot_general(
            q.astype(bf16), k.astype(bf16), (((1,), (1,)), ((), ())),
            preferred_element_type=jnp.float32) * (1.0 / math.sqrt(D))       # (MROWS, MROWS)
        scores = scores + consts_ref[R_MASK:R_MASK + MROWS, 0:MROWS]         # 0 / -1e30 (f32 only)
        scores = scores - jnp.max(scores, axis=-1, keepdims=True)
        p = jnp.exp(scores)
        p = p / jnp.sum(p, axis=-1, keepdims=True)
        attn = jnp.dot(p.astype(bf16), v.astype(bf16),
                       preferred_element_type=jnp.float32)                   # (MROWS, D)
        proj = jnp.dot(attn.astype(bf16), wts_ref[W_PROJ:W_PROJ + D, 0:D],
                       preferred_element_type=jnp.float32)
        x = x + proj + consts_ref[R_BPROJ:R_BPROJ + 1, 0:D]

        # ---- MLP ----
        xn2 = layer_norm(x, consts_ref[R_LN2G:R_LN2G + 1, 0:D],
                         consts_ref[R_LN2B:R_LN2B + 1, 0:D])
        h = jnp.dot(xn2.astype(bf16), wts_ref[W_MLP1:W_MLP1 + D, 0:DH],
                    preferred_element_type=jnp.float32)
        h = h + consts_ref[R_BMLP1:R_BMLP1 + 1, 0:DH]
        h = jax.nn.gelu(h, approximate=True)   # TODO(synk): PyTorch nn.GELU default is exact erf
        x = x + jnp.dot(h.astype(bf16), wts_ref[W_MLP2:W_MLP2 + DH, 0:D],
                        preferred_element_type=jnp.float32) \
              + consts_ref[R_BMLP2:R_BMLP2 + 1, 0:D]

        # ---- drop cls/pad tokens; decoder head; annealed-mean decode per patch ----
        xt = x[0:NT, :]                                                      # (NT, D)
        logits = jnp.dot(xt.astype(bf16), wts_ref[W_DEC:W_DEC + D, 0:Q],
                         preferred_element_type=jnp.float32)
        logits = logits + consts_ref[R_BDEC:R_BDEC + 1, 0:Q]                 # (NT, Q)
        # AnnealedMeanDecodeQ(T=0.38): softmax(logits/T) weighted sum of bin centers
        z = logits * (1.0 / DECODE_T)
        z = z - jnp.max(z, axis=-1, keepdims=True)
        e = jnp.exp(z)
        pq = e / jnp.sum(e, axis=-1, keepdims=True)
        cent_a = consts_ref[R_CENT:R_CENT + 1, 0:Q]
        cent_b = consts_ref[R_CENT + 1:R_CENT + 2, 0:Q]
        ab_a = jnp.sum(pq * cent_a, axis=-1, keepdims=True)                  # (NT, 1)
        ab_b = jnp.sum(pq * cent_b, axis=-1, keepdims=True)                  # (NT, 1)
        pad = jnp.zeros((NT, ENC_PAD), jnp.float32)
        # lane-dense fused output: cols 0:D feat | D:D+Q logits | next 2: ab | pad
        enc_out_ref[...] = jnp.concatenate([xt, logits, ab_a, ab_b, pad], axis=-1)

    @pl.when(pid == 1)
    def _color_path():
        # SoftEncodeAB + GetClassWeights, batched (N, Q, H*W), pixels on the lane axis.
        ab = ab_ref[...].reshape(N, 2, HW)                                   # (N, 2, HW)
        a = ab[:, 0:1, :]
        b = ab[:, 1:2, :]
        ca = consts_ref[R_CAB:R_CAB + Q, 0:1].reshape(1, Q, 1)
        cb = consts_ref[R_CAB:R_CAB + Q, 1:2].reshape(1, Q, 1)
        wt = consts_ref[R_CAB:R_CAB + Q, 2:3].reshape(1, Q, 1)
        d = jnp.square(a - ca) + jnp.square(b - cb)                          # (N, Q, HW)
        w = jnp.exp(d * (-1.0 / (2.0 * SIGMA * SIGMA)))
        qn = w / jnp.sum(w, axis=1, keepdims=True)
        # GetClassWeights: weight of the argmax bin per pixel (first max on ties).
        m = jnp.max(qn, axis=1, keepdims=True)
        qi = jax.lax.broadcasted_iota(jnp.int32, qn.shape, 1)
        idx = jnp.min(jnp.where(qn >= m, qi, Q), axis=1, keepdims=True)
        onehot = (qi == idx).astype(jnp.float32)
        cw = jnp.sum(onehot * wt, axis=1)                                    # (N, HW)
        pad = jnp.zeros((COLOR_ROWS - N * Q - N, HW), jnp.float32)
        # fused output rows: 0:N*Q -> q_actual (batch-major), N*Q:N*Q+N -> class weights
        color_out_ref[...] = jnp.concatenate([qn.reshape(N * Q, HW), cw, pad], axis=0)


# ------------------------- one-time parameter packing -------------------------
def get_class_weights_table(prior, lambda_=LAMBDA):
    # GetClassWeights.__init__
    uniform = jnp.where(prior > 0, 1.0 / jnp.sum(prior > 0), 0.0)
    w = 1.0 / ((1.0 - lambda_) * prior + lambda_ * uniform)
    w = w / jnp.sum(prior * w)
    return w


def prepare_packed_params(params, q_to_ab, prior):
    """Pack all static parameters into two slabs. Run ONCE, outside the jitted forward."""
    # ---- f32 constants slab ----
    c = jnp.zeros((CONST_ROWS, 128), jnp.float32)

    def put(slab, r, v):
        v = jnp.asarray(v, jnp.float32)
        return slab.at[r:r + v.shape[0], 0:v.shape[1]].set(v)

    b_pe = params["b_pe"].reshape(1, D)
    c = put(c, R_BPE, b_pe)
    c = put(c, R_BQKV, params["b_qkv"].reshape(1, 3 * D))
    c = put(c, R_BPROJ, params["b_proj"].reshape(1, D))
    c = put(c, R_BMLP1, params["b_mlp1"].reshape(1, DH))
    c = put(c, R_BMLP2, params["b_mlp2"].reshape(1, D))
    c = put(c, R_BDEC, params["b_dec"].reshape(1, Q))
    c = put(c, R_LN1G, params["ln1_g"].reshape(1, D))
    c = put(c, R_LN1B, params["ln1_b"].reshape(1, D))
    c = put(c, R_LN2G, params["ln2_g"].reshape(1, D))
    c = put(c, R_LN2B, params["ln2_b"].reshape(1, D))
    c = put(c, R_CENT, q_to_ab.T)                           # (2, Q): a centers / b centers

    pos = params["pos_embed"][0]                            # (TT, D)
    cls = params["cls_token"].reshape(1, D)
    # patch rows get pos; cls rows get cls+pos0-b_pe; pad rows get -b_pe
    # (patch-input cls/pad rows are filled with 50.0 so their patch-embed dot is 0).
    emb_add = jnp.concatenate(
        [jnp.tile(pos[1:], (N, 1)),
         jnp.broadcast_to(cls + pos[0:1] - b_pe, (N, D)),
         jnp.broadcast_to(-b_pe, (MROWS - N * TT, D))], axis=0)
    c = put(c, R_EMB, emb_add)

    # block-diagonal attention mask (batch folding) as an additive f32 bias
    idx = jnp.arange(MROWS)
    bid = jnp.where(idx < NT, idx // T, idx - NT)           # pad rows get unique ids
    mask_bias = jnp.where(bid[:, None] == bid[None, :], 0.0, -1e30)
    c = put(c, R_MASK, mask_bias)

    w_table = get_class_weights_table(prior)
    cab = jnp.stack([q_to_ab[:, 0], q_to_ab[:, 1], w_table], axis=-1)   # (Q, 3)
    c = put(c, R_CAB, cab)

    # ---- bf16 weight slab ----
    wslab = jnp.zeros((WT_ROWS, 128), jnp.bfloat16)

    def putw(slab, r, v):
        v = jnp.asarray(v, jnp.bfloat16)
        return slab.at[r:r + v.shape[0], 0:v.shape[1]].set(v)

    w_pe = params["w_pe"]
    w_pe_eff = w_pe[0:PP] + w_pe[PP:2 * PP] + w_pe[2 * PP:3 * PP]   # fold im.repeat(1,3,1,1)
    wslab = putw(wslab, W_PE, w_pe_eff)
    wslab = putw(wslab, W_QKV, params["w_qkv"])
    wslab = putw(wslab, W_PROJ, params["w_proj"])
    wslab = putw(wslab, W_MLP1, params["w_mlp1"])
    wslab = putw(wslab, W_MLP2, params["w_mlp2"])
    wslab = putw(wslab, W_DEC, params["w_dec"])
    return c, wslab


# ------------------------- synthetic CIELAB gamut -----------------------------
def make_gamut():
    vals = jnp.array([-60.0, -20.0, 20.0, 60.0], dtype=jnp.float32)
    aa, bb = jnp.meshgrid(vals, vals, indexing="ij")
    q_to_ab = jnp.stack([aa.ravel(), bb.ravel()], axis=-1)      # (Q, 2) bin centers
    prior = jnp.arange(1, Q + 1, dtype=jnp.float32)
    prior = prior / jnp.sum(prior)                              # synthetic colour prior
    return q_to_ab, prior


# ------------------------------- parameters -----------------------------------
def init_params(key):
    ks = jax.random.split(key, 8)

    def nrm(k, shape, scale=0.02):
        return scale * jax.random.normal(k, shape, dtype=jnp.float32)

    return {
        "w_pe": nrm(ks[0], (3 * P * P, D)),
        "b_pe": jnp.zeros((D,), jnp.float32),
        "cls_token": nrm(ks[1], (1, 1, D)),
        "pos_embed": nrm(ks[2], (1, TT, D)),
        "ln1_g": jnp.ones((D,), jnp.float32), "ln1_b": jnp.zeros((D,), jnp.float32),
        "w_qkv": nrm(ks[3], (D, 3 * D)), "b_qkv": jnp.zeros((3 * D,), jnp.float32),
        "w_proj": nrm(ks[4], (D, D)), "b_proj": jnp.zeros((D,), jnp.float32),
        "ln2_g": jnp.ones((D,), jnp.float32), "ln2_b": jnp.zeros((D,), jnp.float32),
        "w_mlp1": nrm(ks[5], (D, DH)), "b_mlp1": jnp.zeros((DH,), jnp.float32),
        "w_mlp2": nrm(ks[6], (DH, D)), "b_mlp2": jnp.zeros((D,), jnp.float32),
        "w_dec": nrm(ks[7], (D, Q)),
        "b_dec": jnp.zeros((Q,), jnp.float32),
    }


# ------------------------------ Segmenter.forward ------------------------------
def _upsample_patches(x):
    """Nearest P x P patch replication, NCHW: (N, C, HP, WP) -> (N, C, H, W)."""
    n, c, hp, wp = x.shape
    x = jnp.broadcast_to(x[:, :, :, None, :, None], (n, c, hp, P, wp, P))
    return x.reshape(n, c, hp * P, wp * P)


def segmenter_forward(l, gt_ab, consts, weights):
    # ---- data-side layout prep only (all parameter prep is hoisted out of jit) ----
    xpat = l.reshape(N, 1, HP, P, WP, P)
    xpat = jnp.transpose(xpat, (0, 2, 4, 1, 3, 5)).reshape(NT, PP)
    patch_in = jnp.concatenate(
        [xpat, jnp.full((MROWS - NT, PP), 50.0, jnp.float32)], axis=0)  # 50 -> normalized 0
    ab_in = gt_ab.reshape(N * 2, HW)                                    # free reshape

    enc_out, color_out = pl.pallas_call(
        fused_segmenter_kernel,
        out_shape=(jax.ShapeDtypeStruct((2, NT, 128), jnp.float32),
                   jax.ShapeDtypeStruct((2, COLOR_ROWS, HW), jnp.float32)),
        grid=(2,),
        in_specs=[pl.BlockSpec((MROWS, PP), lambda i: (0, 0)),
                  pl.BlockSpec((CONST_ROWS, 128), lambda i: (0, 0)),
                  pl.BlockSpec((WT_ROWS, 128), lambda i: (0, 0)),
                  pl.BlockSpec((N * 2, HW), lambda i: (0, 0))],
        out_specs=(pl.BlockSpec((None, NT, 128), lambda i: (i, 0, 0)),
                   pl.BlockSpec((None, COLOR_ROWS, HW), lambda i: (i, 0, 0))),
        compiler_params=pltpu.CompilerParams(
            dimension_semantics=("parallel",)),   # 2-TC split on v7x; serial elsewhere
    )(patch_in, consts, weights, ab_in)

    enc = enc_out[0]                              # slab written by grid step 0
    feat = enc[:, 0:D]
    logits = enc[:, D:D + Q]
    ab_patch = enc[:, D + Q:D + Q + 2]

    out_feat = feat.reshape(N, T, D)
    # masks / q_pred: per-patch logits replicated to pixel resolution (NCHW).
    # TODO(synk): real decoder is a mask-transformer with bilinear upsample; a linear
    #             head + nearest patch replication is used for the synthetic decoder.
    logits_img = jnp.transpose(logits.reshape(N, HP, WP, Q), (0, 3, 1, 2))
    q_pred = _upsample_patches(logits_img)                      # (N, Q, H, W)
    # RebalanceLoss.forward is identity; AnnealedMeanDecodeQ commutes with the exact
    # nearest-neighbour upsample, so ab was decoded per patch inside the kernel.
    ab_img = jnp.transpose(ab_patch.reshape(N, HP, WP, 2), (0, 3, 1, 2))
    ab_pred = _upsample_patches(ab_img)                         # (N, 2, H, W)

    col = color_out[1]                            # slab written by grid step 1
    # TODO(synk): SoftEncodeAB's 5-nearest-neighbour truncation is replaced by a full
    #             gaussian soft assignment over all bins.
    q_actual = col[0:N * Q].reshape(N, Q, H, W)
    color_weights = col[N * Q:N * Q + N].reshape(N, 1, H, W)

    return ab_pred, q_pred, q_actual, out_feat, color_weights


# ----------------------------------- main --------------------------------------
if __name__ == "__main__":
    key = jax.random.PRNGKey(0)
    k_l, k_ab, k_par = jax.random.split(key, 3)

    # l in [0, 100] (L channel), gt_ab in [-60, 60]
    l = 100.0 * jax.random.uniform(k_l, (N, 1, H, W), dtype=jnp.float32)
    gt_ab = 120.0 * jax.random.uniform(k_ab, (N, 2, H, W), dtype=jnp.float32) - 60.0

    params = init_params(k_par)
    q_to_ab, prior = make_gamut()
    # one-time parameter packing (hoisted out of the per-call hot path)
    consts, weights = prepare_packed_params(params, q_to_ab, prior)
    consts = jax.device_put(consts)
    weights = jax.device_put(weights)

    fwd = jax.jit(segmenter_forward)
    ab_pred, q_pred, q_actual, out_feat, color_weights = fwd(l, gt_ab, consts, weights)
    for t in (ab_pred, q_pred, q_actual, out_feat, color_weights):
        jax.block_until_ready(t)

    assert ab_pred.shape == (N, 2, H, W)
    assert q_pred.shape == (N, Q, H, W)
    assert q_actual.shape == (N, Q, H, W)
    assert out_feat.shape == (N, T, D)
    assert color_weights.shape == (N, 1, H, W)
    assert bool(jnp.all(jnp.isfinite(ab_pred)))
    assert bool(jnp.all(jnp.isfinite(q_pred)))
    assert bool(jnp.all(jnp.isfinite(out_feat)))
    # exact division in the soft-encode normalization -> tight tolerance
    assert bool(jnp.allclose(jnp.sum(q_actual, axis=1), 1.0, atol=1e-4))
    assert bool(jnp.all(color_weights > 0))
    assert bool(jnp.all(jnp.abs(ab_pred) <= 60.0 + 1e-3))   # convex combo of bin centers

    print("KERNEL_OK")
</pallas_src>

<mosaic_0001>
module attributes {stable_mosaic.version = 11 : i64} {
  func.func @fused_segmenter_kernel(%arg0: i32, %arg1: memref<16x64xf32, #tpu.memory_space<vmem>>, %arg2: memref<64x128xf32, #tpu.memory_space<vmem>>, %arg3: memref<320x128xbf16, #tpu.memory_space<vmem>>, %arg4: memref<4x256xf32, #tpu.memory_space<vmem>>, %arg5: memref<1x8x128xf32, #tpu.memory_space<vmem>>, %arg6: memref<1x40x256xf32, #tpu.memory_space<vmem>>) attributes {dimension_semantics = [#tpu.dimension_semantics<parallel>], iteration_bounds = array<i64: 2>, scalar_prefetch = 0 : i64, scratch_operands = 0 : i64, tpu.core_type = #tpu.core_type<tc>, window_params = [{pipeline_mode = #tpu.pipeline_mode<synchronous>, transform_indices = @transform_0, window_bounds = array<i64: 16, 64>}, {pipeline_mode = #tpu.pipeline_mode<synchronous>, transform_indices = @transform_1, window_bounds = array<i64: 64, 128>}, {pipeline_mode = #tpu.pipeline_mode<synchronous>, transform_indices = @transform_2, window_bounds = array<i64: 320, 128>}, {pipeline_mode = #tpu.pipeline_mode<synchronous>, transform_indices = @transform_3, window_bounds = array<i64: 4, 256>}, {transform_indices = @transform_4, window_bounds = array<i64: 1, 8, 128>}, {transform_indices = @transform_5, window_bounds = array<i64: 1, 40, 256>}]} {
    %c0_i32 = arith.constant 0 : i32
    %0 = arith.cmpi eq, %arg0, %c0_i32 : i32
    %1 = arith.extui %0 : i1 to i32
    %c0_i32_0 = arith.constant 0 : i32
    %2 = arith.cmpi ne, %1, %c0_i32_0 : i32
    scf.if %2 {
      %c0 = arith.constant 0 : index
      %c0_2 = arith.constant 0 : index
      %6 = vector.load %arg1[%c0, %c0_2] : memref<16x64xf32, #tpu.memory_space<vmem>>, vector<16x64xf32>
      %cst = arith.constant 5.000000e+01 : f32
      %7 = vector.broadcast %cst : f32 to vector<16x64xf32>
      %8 = arith.subf %6, %7 : vector<16x64xf32>
      %cst_3 = arith.constant 0.00999999977 : f32
      %9 = vector.broadcast %cst_3 : f32 to vector<16x64xf32>
      %10 = arith.mulf %8, %9 : vector<16x64xf32>
      %11 = arith.truncf %10 : vector<16x64xf32> to vector<16x64xbf16>
      %c0_4 = arith.constant 0 : index
      %c0_5 = arith.constant 0 : index
      %12 = vector.load %arg3[%c0_4, %c0_5] : memref<320x128xbf16, #tpu.memory_space<vmem>>, vector<64x32xbf16>
      %cst_6 = arith.constant dense<0.000000e+00> : vector<16x32xf32>
      %13 = tpu.matmul %11, %12, %cst_6 {dimension_numbers = #tpu.dot_dimension_numbers<[1], [0], [0], [1], [0, 0, 1, 1], [], []>} : vector<16x64xbf16>, vector<64x32xbf16>, vector<16x32xf32> -> vector<16x32xf32>
      %c0_7 = arith.constant 0 : index
      %c0_8 = arith.constant 0 : index
      %14 = vector.load %arg2[%c0_7, %c0_8] : memref<64x128xf32, #tpu.memory_space<vmem>>, vector<1x32xf32>
      %15 = vector.broadcast %14 : vector<1x32xf32> to vector<16x32xf32>
      %16 = arith.addf %13, %15 : vector<16x32xf32>
      %c16 = arith.constant 16 : index
      %c0_9 = arith.constant 0 : index
      %17 = vector.load %arg2[%c16, %c0_9] : memref<64x128xf32, #tpu.memory_space<vmem>>, vector<16x32xf32>
      %18 = arith.addf %16, %17 : vector<16x32xf32>
      %c6 = arith.constant 6 : index
      %c0_10 = arith.constant 0 : index
      %19 = vector.load %arg2[%c6, %c0_10] : memref<64x128xf32, #tpu.memory_space<vmem>>, vector<1x32xf32>
      %c7 = arith.constant 7 : index
      %c0_11 = arith.constant 0 : index
      %20 = vector.load %arg2[%c7, %c0_11] : memref<64x128xf32, #tpu.memory_space<vmem>>, vector<1x32xf32>
      %cst_12 = arith.constant dense<0.000000e+00> : vector<16xf32>
      %21 = vector.multi_reduction <add>, %18, %cst_12 [1] : vector<16x32xf32> to vector<16xf32>
      %22 = vector.shape_cast %21 : vector<16xf32> to vector<16x1xf32>
      %cst_13 = arith.constant 3.200000e+01 : f32
      %23 = vector.broadcast %cst_13 : f32 to vector<16x1xf32>
      %24 = arith.divf %22, %23 : vector<16x1xf32>
      %25 = vector.broadcast %24 : vector<16x1xf32> to vector<16x32xf32>
      %26 = arith.subf %18, %25 : vector<16x32xf32>
      %27 = arith.mulf %26, %26 : vector<16x32xf32>
      %cst_14 = arith.constant dense<0.000000e+00> : vector<16xf32>
      %28 = vector.multi_reduction <add>, %27, %cst_14 [1] : vector<16x32xf32> to vector<16xf32>
      %29 = vector.shape_cast %28 : vector<16xf32> to vector<16x1xf32>
      %cst_15 = arith.constant 3.200000e+01 : f32
      %30 = vector.broadcast %cst_15 : f32 to vector<16x1xf32>
      %31 = arith.divf %29, %30 : vector<16x1xf32>
      %32 = vector.broadcast %24 : vector<16x1xf32> to vector<16x32xf32>
      %33 = arith.subf %18, %32 : vector<16x32xf32>
      %cst_16 = arith.constant 9.99999974E-6 : f32
      %34 = vector.broadcast %cst_16 : f32 to vector<16x1xf32>
      %35 = arith.addf %31, %34 : vector<16x1xf32>
      %36 = math.rsqrt %35 : vector<16x1xf32>
      %37 = vector.broadcast %36 : vector<16x1xf32> to vector<16x32xf32>
      %38 = arith.mulf %33, %37 : vector<16x32xf32>
      %39 = vector.broadcast %19 : vector<1x32xf32> to vector<16x32xf32>
      %40 = arith.mulf %38, %39 : vector<16x32xf32>
      %41 = vector.broadcast %20 : vector<1x32xf32> to vector<16x32xf32>
      %42 = arith.addf %40, %41 : vector<16x32xf32>
      %43 = arith.truncf %42 : vector<16x32xf32> to vector<16x32xbf16>
      %c64 = arith.constant 64 : index
      %c0_17 = arith.constant 0 : index
      %44 = vector.load %arg3[%c64, %c0_17] : memref<320x128xbf16, #tpu.memory_space<vmem>>, vector<32x96xbf16>
      %cst_18 = arith.constant dense<0.000000e+00> : vector<16x96xf32>
      %45 = tpu.matmul %43, %44, %cst_18 {dimension_numbers = #tpu.dot_dimension_numbers<[1], [0], [0], [1], [0, 0, 1, 1], [], []>} : vector<16x32xbf16>, vector<32x96xbf16>, vector<16x96xf32> -> vector<16x96xf32>
      %c1 = arith.constant 1 : index
      %c0_19 = arith.constant 0 : index
      %46 = vector.load %arg2[%c1, %c0_19] : memref<64x128xf32, #tpu.memory_space<vmem>>, vector<1x96xf32>
      %47 = vector.broadcast %46 : vector<1x96xf32> to vector<16x96xf32>
      %48 = arith.addf %45, %47 : vector<16x96xf32>
      %49 = vector.extract_strided_slice %48 {offsets = [0, 0], sizes = [16, 32], strides = [1, 1]} : vector<16x96xf32> to vector<16x32xf32>
      %50 = vector.extract_strided_slice %48 {offsets = [0, 32], sizes = [16, 32], strides = [1, 1]} : vector<16x96xf32> to vector<16x32xf32>
      %51 = vector.extract_strided_slice %48 {offsets = [0, 64], sizes = [16, 32], strides = [1, 1]} : vector<16x96xf32> to vector<16x32xf32>
      %52 = arith.truncf %49 : vector<16x32xf32> to vector<16x32xbf16>
      %53 = arith.truncf %50 : vector<16x32xf32> to vector<16x32xbf16>
      %cst_20 = arith.constant dense<0.000000e+00> : vector<16x16xf32>
      %54 = tpu.matmul %52, %53, %cst_20 {dimension_numbers = #tpu.dot_dimension_numbers<[1], [1], [0], [0], [0, 0, 1, 0], [], []>} : vector<16x32xbf16>, vector<16x32xbf16>, vector<16x16xf32> -> vector<16x16xf32>
      %cst_21 = arith.constant 0.176776692 : f32
      %55 = vector.broadcast %cst_21 : f32 to vector<16x16xf32>
      %56 = arith.mulf %54, %55 : vector<16x16xf32>
      %c32 = arith.constant 32 : index
      %c0_22 = arith.constant 0 : index
      %57 = vector.load %arg2[%c32, %c0_22] : memref<64x128xf32, #tpu.memory_space<vmem>>, vector<16x16xf32>
      %58 = arith.addf %56, %57 : vector<16x16xf32>
      %cst_23 = arith.constant dense<0xFF800000> : vector<16xf32>
      %59 = vector.multi_reduction <maximumf>, %58, %cst_23 [1] : vector<16x16xf32> to vector<16xf32>
      %60 = vector.shape_cast %59 : vector<16xf32> to vector<16x1xf32>
      %61 = vector.broadcast %60 : vector<16x1xf32> to vector<16x16xf32>
      %62 = arith.subf %58, %61 : vector<16x16xf32>
      %63 = math.exp %62 : vector<16x16xf32>
      %cst_24 = arith.constant dense<0.000000e+00> : vector<16xf32>
      %64 = vector.multi_reduction <add>, %63, %cst_24 [1] : vector<16x16xf32> to vector<16xf32>
      %65 = vector.shape_cast %64 : vector<16xf32> to vector<16x1xf32>
      %66 = vector.broadcast %65 : vector<16x1xf32> to vector<16x16xf32>
      %67 = arith.divf %63, %66 : vector<16x16xf32>
      %68 = arith.truncf %67 : vector<16x16xf32> to vector<16x16xbf16>
      %69 = arith.truncf %51 : vector<16x32xf32> to vector<16x32xbf16>
      %cst_25 = arith.constant dense<0.000000e+00> : vector<16x32xf32>
      %70 = tpu.matmul %68, %69, %cst_25 {dimension_numbers = #tpu.dot_dimension_numbers<[1], [0], [0], [1], [0, 0, 1, 1], [], []>} : vector<16x16xbf16>, vector<16x32xbf16>, vector<16x32xf32> -> vector<16x32xf32>
      %71 = arith.truncf %70 : vector<16x32xf32> to vector<16x32xbf16>
      %c96 = arith.constant 96 : index
      %c0_26 = arith.constant 0 : index
      %72 = vector.load %arg3[%c96, %c0_26] : memref<320x128xbf16, #tpu.memory_space<vmem>>, vector<32x32xbf16>
      %cst_27 = arith.constant dense<0.000000e+00> : vector<16x32xf32>
      %73 = tpu.matmul %71, %72, %cst_27 {dimension_numbers = #tpu.dot_dimension_numbers<[1], [0], [0], [1], [0, 0, 1, 1], [], []>} : vector<16x32xbf16>, vector<32x32xbf16>, vector<16x32xf32> -> vector<16x32xf32>
      %74 = arith.addf %18, %73 : vector<16x32xf32>
      %c2 = arith.constant 2 : index
      %c0_28 = arith.constant 0 : index
      %75 = vector.load %arg2[%c2, %c0_28] : memref<64x128xf32, #tpu.memory_space<vmem>>, vector<1x32xf32>
      %76 = vector.broadcast %75 : vector<1x32xf32> to vector<16x32xf32>
      %77 = arith.addf %74, %76 : vector<16x32xf32>
      %c8 = arith.constant 8 : index
      %c0_29 = arith.constant 0 : index
      %78 = vector.load %arg2[%c8, %c0_29] : memref<64x128xf32, #tpu.memory_space<vmem>>, vector<1x32xf32>
      %c9 = arith.constant 9 : index
      %c0_30 = arith.constant 0 : index
      %79 = vector.load %arg2[%c9, %c0_30] : memref<64x128xf32, #tpu.memory_space<vmem>>, vector<1x32xf32>
      %cst_31 = arith.constant dense<0.000000e+00> : vector<16xf32>
      %80 = vector.multi_reduction <add>, %77, %cst_31 [1] : vector<16x32xf32> to vector<16xf32>
      %81 = vector.shape_cast %80 : vector<16xf32> to vector<16x1xf32>
      %cst_32 = arith.constant 3.200000e+01 : f32
      %82 = vector.broadcast %cst_32 : f32 to vector<16x1xf32>
      %83 = arith.divf %81, %82 : vector<16x1xf32>
      %84 = vector.broadcast %83 : vector<16x1xf32> to vector<16x32xf32>
      %85 = arith.subf %77, %84 : vector<16x32xf32>
      %86 = arith.mulf %85, %85 : vector<16x32xf32>
      %cst_33 = arith.constant dense<0.000000e+00> : vector<16xf32>
      %87 = vector.multi_reduction <add>, %86, %cst_33 [1] : vector<16x32xf32> to vector<16xf32>
      %88 = vector.shape_cast %87 : vector<16xf32> to vector<16x1xf32>
      %cst_34 = arith.constant 3.200000e+01 : f32
      %89 = vector.broadcast %cst_34 : f32 to vector<16x1xf32>
      %90 = arith.divf %88, %89 : vector<16x1xf32>
      %91 = vector.broadcast %83 : vector<16x1xf32> to vector<16x32xf32>
      %92 = arith.subf %77, %91 : vector<16x32xf32>
      %cst_35 = arith.constant 9.99999974E-6 : f32
      %93 = vector.broadcast %cst_35 : f32 to vector<16x1xf32>
      %94 = arith.addf %90, %93 : vector<16x1xf32>
      %95 = math.rsqrt %94 : vector<16x1xf32>
      %96 = vector.broadcast %95 : vector<16x1xf32> to vector<16x32xf32>
      %97 = arith.mulf %92, %96 : vector<16x32xf32>
      %98 = vector.broadcast %78 : vector<1x32xf32> to vector<16x32xf32>
      %99 = arith.mulf %97, %98 : vector<16x32xf32>
      %100 = vector.broadcast %79 : vector<1x32xf32> to vector<16x32xf32>
      %101 = arith.addf %99, %100 : vector<16x32xf32>
      %102 = arith.truncf %101 : vector<16x32xf32> to vector<16x32xbf16>
      %c128 = arith.constant 128 : index
      %c0_36 = arith.constant 0 : index
      %103 = vector.load %arg3[%c128, %c0_36] : memref<320x128xbf16, #tpu.memory_space<vmem>>, vector<32x128xbf16>
      %cst_37 = arith.constant dense<0.000000e+00> : vector<16x128xf32>
      %104 = tpu.matmul %102, %103, %cst_37 {dimension_numbers = #tpu.dot_dimension_numbers<[1], [0], [0], [1], [0, 0, 1, 1], [], []>} : vector<16x32xbf16>, vector<32x128xbf16>, vector<16x128xf32> -> vector<16x128xf32>
      %c3 = arith.constant 3 : index
      %c0_38 = arith.constant 0 : index
      %105 = vector.load %arg2[%c3, %c0_38] : memref<64x128xf32, #tpu.memory_space<vmem>>, vector<1x128xf32>
      %106 = vector.broadcast %105 : vector<1x128xf32> to vector<16x128xf32>
      %107 = arith.addf %104, %106 : vector<16x128xf32>
      %108 = arith.mulf %107, %107 : vector<16x128xf32>
      %109 = arith.mulf %107, %108 : vector<16x128xf32>
      %cst_39 = arith.constant 4.471500e-02 : f32
      %110 = vector.broadcast %cst_39 : f32 to vector<16x128xf32>
      %111 = arith.mulf %110, %109 : vector<16x128xf32>
      %112 = arith.addf %107, %111 : vector<16x128xf32>
      %cst_40 = arith.constant 0.797884583 : f32
      %113 = vector.broadcast %cst_40 : f32 to vector<16x128xf32>
      %114 = arith.mulf %113, %112 : vector<16x128xf32>
      %115 = math.tanh %114 : vector<16x128xf32>
      %cst_41 = arith.constant 1.000000e+00 : f32
      %116 = vector.broadcast %cst_41 : f32 to vector<16x128xf32>
      %117 = arith.addf %116, %115 : vector<16x128xf32>
      %cst_42 = arith.constant 5.000000e-01 : f32
      %118 = vector.broadcast %cst_42 : f32 to vector<16x128xf32>
      %119 = arith.mulf %118, %117 : vector<16x128xf32>
      %120 = arith.mulf %107, %119 : vector<16x128xf32>
      %121 = arith.truncf %120 : vector<16x128xf32> to vector<16x128xbf16>
      %c160 = arith.constant 160 : index
      %c0_43 = arith.constant 0 : index
      %122 = vector.load %arg3[%c160, %c0_43] : memref<320x128xbf16, #tpu.memory_space<vmem>>, vector<128x32xbf16>
      %cst_44 = arith.constant dense<0.000000e+00> : vector<16x32xf32>
      %123 = tpu.matmul %121, %122, %cst_44 {dimension_numbers = #tpu.dot_dimension_numbers<[1], [0], [0], [1], [0, 0, 1, 1], [], []>} : vector<16x128xbf16>, vector<128x32xbf16>, vector<16x32xf32> -> vector<16x32xf32>
      %124 = arith.addf %77, %123 : vector<16x32xf32>
      %c4 = arith.constant 4 : index
      %c0_45 = arith.constant 0 : index
      %125 = vector.load %arg2[%c4, %c0_45] : memref<64x128xf32, #tpu.memory_space<vmem>>, vector<1x32xf32>
      %126 = vector.broadcast %125 : vector<1x32xf32> to vector<16x32xf32>
      %127 = arith.addf %124, %126 : vector<16x32xf32>
      %128 = vector.extract_strided_slice %127 {offsets = [0, 0], sizes = [8, 32], strides = [1, 1]} : vector<16x32xf32> to vector<8x32xf32>
      %129 = arith.truncf %128 : vector<8x32xf32> to vector<8x32xbf16>
      %c288 = arith.constant 288 : index
      %c0_46 = arith.constant 0 : index
      %130 = vector.load %arg3[%c288, %c0_46] : memref<320x128xbf16, #tpu.memory_space<vmem>>, vector<32x16xbf16>
      %cst_47 = arith.constant dense<0.000000e+00> : vector<8x16xf32>
      %131 = tpu.matmul %129, %130, %cst_47 {dimension_numbers = #tpu.dot_dimension_numbers<[1], [0], [0], [1], [0, 0, 1, 1], [], []>} : vector<8x32xbf16>, vector<32x16xbf16>, vector<8x16xf32> -> vector<8x16xf32>
      %c5 = arith.constant 5 : index
      %c0_48 = arith.constant 0 : index
      %132 = vector.load %arg2[%c5, %c0_48] : memref<64x128xf32, #tpu.memory_space<vmem>>, vector<1x16xf32>
      %133 = vector.broadcast %132 : vector<1x16xf32> to vector<8x16xf32>
      %134 = arith.addf %131, %133 : vector<8x16xf32>
      %cst_49 = arith.constant 2.63157892 : f32
      %135 = vector.broadcast %cst_49 : f32 to vector<8x16xf32>
      %136 = arith.mulf %134, %135 : vector<8x16xf32>
      %cst_50 = arith.constant dense<0xFF800000> : vector<8xf32>
      %137 = vector.multi_reduction <maximumf>, %136, %cst_50 [1] : vector<8x16xf32> to vector<8xf32>
      %138 = vector.shape_cast %137 : vector<8xf32> to vector<8x1xf32>
      %139 = vector.broadcast %138 : vector<8x1xf32> to vector<8x16xf32>
      %140 = arith.subf %136, %139 : vector<8x16xf32>
      %141 = math.exp %140 : vector<8x16xf32>
      %cst_51 = arith.constant dense<0.000000e+00> : vector<8xf32>
      %142 = vector.multi_reduction <add>, %141, %cst_51 [1] : vector<8x16xf32> to vector<8xf32>
      %143 = vector.shape_cast %142 : vector<8xf32> to vector<8x1xf32>
      %144 = vector.broadcast %143 : vector<8x1xf32> to vector<8x16xf32>
      %145 = arith.divf %141, %144 : vector<8x16xf32>
      %c10 = arith.constant 10 : index
      %c0_52 = arith.constant 0 : index
      %146 = vector.load %arg2[%c10, %c0_52] : memref<64x128xf32, #tpu.memory_space<vmem>>, vector<1x16xf32>
      %c11 = arith.constant 11 : index
      %c0_53 = arith.constant 0 : index
      %147 = vector.load %arg2[%c11, %c0_53] : memref<64x128xf32, #tpu.memory_space<vmem>>, vector<1x16xf32>
      %148 = vector.broadcast %146 : vector<1x16xf32> to vector<8x16xf32>
      %149 = arith.mulf %145, %148 : vector<8x16xf32>
      %cst_54 = arith.constant dense<0.000000e+00> : vector<8xf32>
      %150 = vector.multi_reduction <add>, %149, %cst_54 [1] : vector<8x16xf32> to vector<8xf32>
      %151 = vector.shape_cast %150 : vector<8xf32> to vector<8x1xf32>
      %152 = vector.broadcast %147 : vector<1x16xf32> to vector<8x16xf32>
      %153 = arith.mulf %145, %152 : vector<8x16xf32>
      %cst_55 = arith.constant dense<0.000000e+00> : vector<8xf32>
      %154 = vector.multi_reduction <add>, %153, %cst_55 [1] : vector<8x16xf32> to vector<8xf32>
      %155 = vector.shape_cast %154 : vector<8xf32> to vector<8x1xf32>
      %cst_56 = arith.constant 0.000000e+00 : f32
      %156 = vector.broadcast %cst_56 : f32 to vector<8x78xf32>
      %157 = tpu.concatenate %128, %134, %151, %155, %156 in 1 : vector<8x32xf32>, vector<8x16xf32>, vector<8x1xf32>, vector<8x1xf32>, vector<8x78xf32> -> vector<8x128xf32>
      %c0_57 = arith.constant 0 : index
      %c0_58 = arith.constant 0 : index
      %c0_59 = arith.constant 0 : index
      %158 = vector.load %arg5[%c0_57, %c0_58, %c0_59] : memref<1x8x128xf32, #tpu.memory_space<vmem>>, vector<1x8x128xf32>
      %159 = vector.shape_cast %158 : vector<1x8x128xf32> to vector<8x128xf32>
      %160 = vector.shape_cast %157 : vector<8x128xf32> to vector<1x8x128xf32>
      tpu.vector_store %arg5[%c0_57, %c0_58, %c0_59], %160 {strides = array<i32>} : memref<1x8x128xf32, #tpu.memory_space<vmem>>, vector<1x8x128xf32>,
    } else {
    }
    %c1_i32 = arith.constant 1 : i32
    %3 = arith.cmpi eq, %arg0, %c1_i32 : i32
    %4 = arith.extui %3 : i1 to i32
    %c0_i32_1 = arith.constant 0 : i32
    %5 = arith.cmpi ne, %4, %c0_i32_1 : i32
    scf.if %5 {
      %c0 = arith.constant 0 : index
      %c0_2 = arith.constant 0 : index
      %6 = vector.load %arg4[%c0, %c0_2] : memref<4x256xf32, #tpu.memory_space<vmem>>, vector<4x256xf32>
      %7 = vector.shape_cast %6 : vector<4x256xf32> to vector<2x2x256xf32>
      %8 = vector.extract_strided_slice %7 {offsets = [0, 0, 0], sizes = [2, 1, 256], strides = [1, 1, 1]} : vector<2x2x256xf32> to vector<2x1x256xf32>
      %9 = vector.extract_strided_slice %7 {offsets = [0, 1, 0], sizes = [2, 1, 256], strides = [1, 1, 1]} : vector<2x2x256xf32> to vector<2x1x256xf32>
      %c48 = arith.constant 48 : index
      %c0_3 = arith.constant 0 : index
      %10 = vector.load %arg2[%c48, %c0_3] : memref<64x128xf32, #tpu.memory_space<vmem>>, vector<16x1xf32>
      %11 = vector.shape_cast %10 : vector<16x1xf32> to vector<1x16x1xf32>
      %c48_4 = arith.constant 48 : index
      %c1 = arith.constant 1 : index
      %12 = vector.load %arg2[%c48_4, %c1] : memref<64x128xf32, #tpu.memory_space<vmem>>, vector<16x1xf32>
      %13 = vector.shape_cast %12 : vector<16x1xf32> to vector<1x16x1xf32>
      %c48_5 = arith.constant 48 : index
      %c2 = arith.constant 2 : index
      %14 = vector.load %arg2[%c48_5, %c2] : memref<64x128xf32, #tpu.memory_space<vmem>>, vector<16x1xf32>
      %15 = vector.shape_cast %14 : vector<16x1xf32> to vector<1x16x1xf32>
      %16 = vector.broadcast %8 : vector<2x1x256xf32> to vector<2x16x256xf32>
      %17 = vector.broadcast %11 : vector<1x16x1xf32> to vector<2x16x256xf32>
      %18 = arith.subf %16, %17 : vector<2x16x256xf32>
      %19 = arith.mulf %18, %18 : vector<2x16x256xf32>
      %20 = vector.broadcast %9 : vector<2x1x256xf32> to vector<2x16x256xf32>
      %21 = vector.broadcast %13 : vector<1x16x1xf32> to vector<2x16x256xf32>
      %22 = arith.subf %20, %21 : vector<2x16x256xf32>
      %23 = arith.mulf %22, %22 : vector<2x16x256xf32>
      %24 = arith.addf %19, %23 : vector<2x16x256xf32>
      %cst = arith.constant -2.000000e-02 : f32
      %25 = vector.broadcast %cst : f32 to vector<2x16x256xf32>
      %26 = arith.mulf %24, %25 : vector<2x16x256xf32>
      %27 = math.exp %26 : vector<2x16x256xf32>
      %cst_6 = arith.constant dense<0.000000e+00> : vector<2x256xf32>
      %28 = vector.multi_reduction <add>, %27, %cst_6 [1] : vector<2x16x256xf32> to vector<2x256xf32>
      %29 = vector.shape_cast %28 : vector<2x256xf32> to vector<2x1x256xf32>
      %30 = vector.broadcast %29 : vector<2x1x256xf32> to vector<2x16x256xf32>
      %31 = arith.divf %27, %30 : vector<2x16x256xf32>
      %cst_7 = arith.constant dense<0xFF800000> : vector<2x256xf32>
      %32 = vector.multi_reduction <maximumf>, %31, %cst_7 [1] : vector<2x16x256xf32> to vector<2x256xf32>
      %33 = vector.shape_cast %32 : vector<2x256xf32> to vector<2x1x256xf32>
      %34 = tpu.iota {dimensions = array<i32: 1>} : vector<2x16x256xi32>
      %35 = vector.broadcast %33 : vector<2x1x256xf32> to vector<2x16x256xf32>
      %36 = arith.cmpf oge, %31, %35 : vector<2x16x256xf32>
      %c16_i32 = arith.constant 16 : i32
      %37 = vector.broadcast %c16_i32 : i32 to vector<2x16x256xi32>
      %38 = arith.select %36, %34, %37 : vector<2x16x256xi1>, vector<2x16x256xi32>
      %cst_8 = arith.constant dense<2147483647> : vector<2x256xi32>
      %39 = vector.multi_reduction <minsi>, %38, %cst_8 [1] : vector<2x16x256xi32> to vector<2x256xi32>
      %40 = vector.shape_cast %39 : vector<2x256xi32> to vector<2x1x256xi32>
      %41 = vector.broadcast %40 : vector<2x1x256xi32> to vector<2x16x256xi32>
      %42 = arith.cmpi eq, %34, %41 : vector<2x16x256xi32>
      %43 = arith.extui %42 : vector<2x16x256xi1> to vector<2x16x256xi32>
      %44 = arith.sitofp %43 : vector<2x16x256xi32> to vector<2x16x256xf32>
      %45 = vector.broadcast %15 : vector<1x16x1xf32> to vector<2x16x256xf32>
      %46 = arith.mulf %44, %45 : vector<2x16x256xf32>
      %cst_9 = arith.constant dense<0.000000e+00> : vector<2x256xf32>
      %47 = vector.multi_reduction <add>, %46, %cst_9 [1] : vector<2x16x256xf32> to vector<2x256xf32>
      %cst_10 = arith.constant 0.000000e+00 : f32
      %48 = vector.broadcast %cst_10 : f32 to vector<6x256xf32>
      %49 = vector.shape_cast %31 : vector<2x16x256xf32> to vector<32x256xf32>
      %50 = tpu.concatenate %49, %47, %48 in 0 : vector<32x256xf32>, vector<2x256xf32>, vector<6x256xf32> -> vector<40x256xf32>
      %c0_11 = arith.constant 0 : index
      %c0_12 = arith.constant 0 : index
      %c0_13 = arith.constant 0 : index
      %51 = vector.load %arg6[%c0_11, %c0_12, %c0_13] : memref<1x40x256xf32, #tpu.memory_space<vmem>>, vector<1x40x256xf32>
      %52 = vector.shape_cast %51 : vector<1x40x256xf32> to vector<40x256xf32>
      %53 = vector.shape_cast %50 : vector<40x256xf32> to vector<1x40x256xf32>
      tpu.vector_store %arg6[%c0_11, %c0_12, %c0_13], %53 {strides = array<i32>} : memref<1x40x256xf32, #tpu.memory_space<vmem>>, vector<1x40x256xf32>,
    } else {
    }
    return
  }
  func.func @transform_0(%arg0: i32) -> (i32, i32) {
    %c0_i32 = arith.constant 0 : i32
    %c0_i32_0 = arith.constant 0 : i32
    %c0_i32_1 = arith.constant 0 : i32
    return %c0_i32, %c0_i32_0 : i32, i32
  }
  func.func @transform_1(%arg0: i32) -> (i32, i32) {
    %c0_i32 = arith.constant 0 : i32
    %c0_i32_0 = arith.constant 0 : i32
    %c0_i32_1 = arith.constant 0 : i32
    return %c0_i32, %c0_i32_0 : i32, i32
  }
  func.func @transform_2(%arg0: i32) -> (i32, i32) {
    %c0_i32 = arith.constant 0 : i32
    %c0_i32_0 = arith.constant 0 : i32
    %c0_i32_1 = arith.constant 0 : i32
    return %c0_i32, %c0_i32_0 : i32, i32
  }
  func.func @transform_3(%arg0: i32) -> (i32, i32) {
    %c0_i32 = arith.constant 0 : i32
    %c0_i32_0 = arith.constant 0 : i32
    %c0_i32_1 = arith.constant 0 : i32
    return %c0_i32, %c0_i32_0 : i32, i32
  }
  func.func @transform_4(%arg0: i32) -> (i32, i32, i32) {
    %c0_i32 = arith.constant 0 : i32
    %c0_i32_0 = arith.constant 0 : i32
    %c0_i32_1 = arith.constant 0 : i32
    return %arg0, %c0_i32, %c0_i32_0 : i32, i32, i32
  }
  func.func @transform_5(%arg0: i32) -> (i32, i32, i32) {
    %c0_i32 = arith.constant 0 : i32
    %c0_i32_0 = arith.constant 0 : i32
    %c0_i32_1 = arith.constant 0 : i32
    return %arg0, %c0_i32, %c0_i32_0 : i32, i32, i32
  }
}

</mosaic_0001>

<llo_original>
// kernel: segmenter_forward.1
$region0: #{segmenter_forward.1}
  #allocation0 [shape = 'u32[]', space=smem, size = 0x4, offset = 0x4, fixed_abs, tag = 'smem constant byte address 0x4 - core index']
  #allocation1 [shape = 'u32[144,128]{1,0:T(1,128)}', space=vmem, size = 0x12000, scoped, tag = 'internal scratch']
  %s0 = inlined_call_operand.vmem [shape: f32[16,64], index: 0, kind: input, shape index: {}]
  %s1 = inlined_call_operand.vmem [shape: f32[64,128], index: 1, kind: input, shape index: {}]
  %s2 = inlined_call_operand.vmem [shape: bf16[320,128], index: 2, kind: input, shape index: {}]
  %s3 = inlined_call_operand.vmem [shape: f32[4,256], index: 3, kind: input, shape index: {}]
  %s4 = inlined_call_operand.vmem [shape: f32[2,8,128], index: 4, kind: output, shape index: {0}]
  %s5 = inlined_call_operand.vmem [shape: f32[2,40,256], index: 5, kind: output, shape index: {1}]
  %6 = xla_tuple %s4, %s5
  %s7 = sld [smem:[#allocation0]]
  $region65: #{segmenter_forward.1} parent=0
    _
  %s9 = ssub.s32 1, %s7
  %s10 = scalar_select 0, %s9, %s7
  loop: start=0, step=1, limit=4
  $region2: #{segmenter_forward.1} parent=0 // loop_pre_header
    _
  $region3: #{segmenter_forward.1} parent=0 // loop_header
    %s12 = sphi 0, %s16
    %p13 = scmp.ge.s32.totalorder %s12, 4
    %s20 = sphi 0, %s20
    %s22 = sphi 0, %s20
    %s23 = sphi 0, %s22
    %s37 = sphi 0, %s23
    %s41 = sphi 0, %s41
    %s43 = sphi 0, %s41
    %s44 = sphi 0, %s43
    %s58 = sphi 0, %s44
    %s62 = sphi 0, %s62
    %s64 = sphi 0, %s62
    %s65 = sphi 0, %s64
    %s79 = sphi 0, %s65
    %s83 = sphi 0, %s83
    %s85 = sphi 0, %s83
    %s86 = sphi 0, %s85
    %s100 = sphi 0, %s86
    %s106 = sphi 0, %s108
    %s109 = sphi 0, %s106
    %s110 = sphi 0, %s109
    %s126 = sphi 0, %s110
    %s132 = sphi 0, %s134
    %s135 = sphi 0, %s132
    %s136 = sphi 0, %s135
    %s152 = sphi 0, %s136
  $region4: #{segmenter_forward.1} parent=0 // loop_header_branch
    %15 = sbr.rel (%p13) target = $region8
  $region5: #{segmenter_forward.1} parent=0 // loop_body
    %s17 = ssub.s32 %s12, 1
    %s18 = ssub.s32 %s12, 2
    %s19 = sadd.s32 %s12, 1
    %s21 = sadd.s32 %s20, 1
    %p24 = scmp.eq.s32.totalorder %s12, 1
    %p25 = scmp.ne.s32.totalorder %s20, %s22
    %p26 = scmp.eq.s32.totalorder %s12, 0
    %p27 = por %p25, %p26
    %p28 = scmp.ne.s32.totalorder %s20, %s22
    %p29 = scmp.eq.s32.totalorder %s17, 1
    %p30 = por %p28, %p29
    %p31 = scmp.ne.s32.totalorder %s22, %s23
    %p32 = scmp.eq.s32.totalorder %s17, 0
    %p33 = por %p31, %p32
    %p34 = scmp.ne.s32.totalorder %s22, %s23
    %p35 = scmp.eq.s32.totalorder %s18, 1
    %p36 = por %p34, %p35
    %p38 = scmp.ne.s32.totalorder %s23, %s37
    %p39 = scmp.eq.s32.totalorder %s18, 0
    %p40 = por %p38, %p39
    %s42 = sadd.s32 %s41, 1
    %p45 = scmp.eq.s32.totalorder %s12, 1
    %p46 = scmp.ne.s32.totalorder %s41, %s43
    %p47 = scmp.eq.s32.totalorder %s12, 0
    %p48 = por %p46, %p47
    %p49 = scmp.ne.s32.totalorder %s41, %s43
    %p50 = scmp.eq.s32.totalorder %s17, 1
    %p51 = por %p49, %p50
    %p52 = scmp.ne.s32.totalorder %s43, %s44
    %p53 = scmp.eq.s32.totalorder %s17, 0
    %p54 = por %p52, %p53
    %p55 = scmp.ne.s32.totalorder %s43, %s44
    %p56 = scmp.eq.s32.totalorder %s18, 1
    %p57 = por %p55, %p56
    %p59 = scmp.ne.s32.totalorder %s44, %s58
    %p60 = scmp.eq.s32.totalorder %s18, 0
    %p61 = por %p59, %p60
    %s63 = sadd.s32 %s62, 1
    %p66 = scmp.eq.s32.totalorder %s12, 1
    %p67 = scmp.ne.s32.totalorder %s62, %s64
    %p68 = scmp.eq.s32.totalorder %s12, 0
    %p69 = por %p67, %p68
    %p70 = scmp.ne.s32.totalorder %s62, %s64
    %p71 = scmp.eq.s32.totalorder %s17, 1
    %p72 = por %p70, %p71
    %p73 = scmp.ne.s32.totalorder %s64, %s65
    %p74 = scmp.eq.s32.totalorder %s17, 0
    %p75 = por %p73, %p74
    %p76 = scmp.ne.s32.totalorder %s64, %s65
    %p77 = scmp.eq.s32.totalorder %s18, 1
    %p78 = por %p76, %p77
    %p80 = scmp.ne.s32.totalorder %s65, %s79
    %p81 = scmp.eq.s32.totalorder %s18, 0
    %p82 = por %p80, %p81
    %s84 = sadd.s32 %s83, 1
    %p87 = scmp.eq.s32.totalorder %s12, 1
    %p88 = scmp.ne.s32.totalorder %s83, %s85
    %p89 = scmp.eq.s32.totalorder %s12, 0
    %p90 = por %p88, %p89
    %p91 = scmp.ne.s32.totalorder %s83, %s85
    %p92 = scmp.eq.s32.totalorder %s17, 1
    %p93 = por %p91, %p92
    %p94 = scmp.ne.s32.totalorder %s85, %s86
    %p95 = scmp.eq.s32.totalorder %s17, 0
    %p96 = por %p94, %p95
    %p97 = scmp.ne.s32.totalorder %s85, %s86
    %p98 = scmp.eq.s32.totalorder %s18, 1
    %p99 = por %p97, %p98
    %p101 = scmp.ne.s32.totalorder %s86, %s100
    %p102 = scmp.eq.s32.totalorder %s18, 0
    %p103 = por %p101, %p102
    %s104 = ssub.s32 %s12, %s19
    %p105 = scmp.eq.s32.totalorder %s104, 0
    %s107 = sadd.s32 %s106, 1
    %s108 = scalar_select %p105, %s106, %s107
    %p111 = pneg %p105
    %p112 = scmp.eq.s32.totalorder %s12, 1
    %p113 = por %p111, %p112
    %p114 = scmp.ne.s32.totalorder %s106, %s109
    %p115 = scmp.eq.s32.totalorder %s12, 0
    %p116 = por %p114, %p115
    %p117 = scmp.ne.s32.totalorder %s106, %s109
    %p118 = scmp.eq.s32.totalorder %s17, 1
    %p119 = por %p117, %p118
    %p120 = scmp.ne.s32.totalorder %s109, %s110
    %p121 = scmp.eq.s32.totalorder %s17, 0
    %p122 = por %p120, %p121
    %p123 = scmp.ne.s32.totalorder %s109, %s110
    %p124 = scmp.eq.s32.totalorder %s18, 1
    %p125 = por %p123, %p124
    %p127 = scmp.ne.s32.totalorder %s110, %s126
    %p128 = scmp.eq.s32.totalorder %s18, 0
    %p129 = por %p127, %p128
    %s130 = ssub.s32 %s12, %s19
    %p131 = scmp.eq.s32.totalorder %s130, 0
    %s133 = sadd.s32 %s132, 1
    %s134 = scalar_select %p131, %s132, %s133
    %p137 = pneg %p131
    %p138 = scmp.eq.s32.totalorder %s12, 1
    %p139 = por %p137, %p138
    %p140 = scmp.ne.s32.totalorder %s132, %s135
    %p141 = scmp.eq.s32.totalorder %s12, 0
    %p142 = por %p140, %p141
    %p143 = scmp.ne.s32.totalorder %s132, %s135
    %p144 = scmp.eq.s32.totalorder %s17, 1
    %p145 = por %p143, %p144
    %p146 = scmp.ne.s32.totalorder %s135, %s136
    %p147 = scmp.eq.s32.totalorder %s17, 0
    %p148 = por %p146, %p147
    %p149 = scmp.ne.s32.totalorder %s135, %s136
    %p150 = scmp.eq.s32.totalorder %s18, 1
    %p151 = por %p149, %p150
    %p153 = scmp.ne.s32.totalorder %s136, %s152
    %p154 = scmp.eq.s32.totalorder %s18, 0
    %p155 = por %p153, %p154
    %p156 = scmp.le.s32.totalorder 1, %s12
    %p157 = scmp.lt.s32.totalorder %s12, 3
    %p158 = pnand %p156, %p157
    %p159 = pneg %p158
    // Predicated region
    $region9: #{segmenter_forward.1} parent=5 // pred_check
      _
    $region10: #{segmenter_forward.1} parent=5 // pred_check_branch
      %161 = sbr.rel (%p158) target = $region12
    $region11: #{segmenter_forward.1} parent=5 // pred_region
      %s162 = ssub.s32 %s12, 1
      // Predicated region
      $region13: #{segmenter_forward.1} parent=11 // pred_check
        %p163 = pneg %p33
      $region14: #{segmenter_forward.1} parent=11 // pred_check_branch
        %165 = sbr.rel (%p163) target = $region16
      $region15: #{segmenter_forward.1} parent=11 // pred_region
        _
      $region16: #{segmenter_forward.1} parent=11 // pred_fallthru
        _
      // Predicated region
      $region17: #{segmenter_forward.1} parent=11 // pred_check
        %p166 = pneg %p54
      $region18: #{segmenter_forward.1} parent=11 // pred_check_branch
        %168 = sbr.rel (%p166) target = $region20
      $region19: #{segmenter_forward.1} parent=11 // pred_region
        _
      $region20: #{segmenter_forward.1} parent=11 // pred_fallthru
        _
      // Predicated region
      $region21: #{segmenter_forward.1} parent=11 // pred_check
        %p169 = pneg %p75
      $region22: #{segmenter_forward.1} parent=11 // pred_check_branch
        %171 = sbr.rel (%p169) target = $region24
      $region23: #{segmenter_forward.1} parent=11 // pred_region
        _
      $region24: #{segmenter_forward.1} parent=11 // pred_fallthru
        _
      // Predicated region
      $region25: #{segmenter_forward.1} parent=11 // pred_check
        %p172 = pneg %p96
      $region26: #{segmenter_forward.1} parent=11 // pred_check_branch
        %174 = sbr.rel (%p172) target = $region28
      $region27: #{segmenter_forward.1} parent=11 // pred_region
        _
      $region28: #{segmenter_forward.1} parent=11 // pred_fallthru
        _
    $region12: #{segmenter_forward.1} parent=5 // pred_fallthru
      _
    %p175 = scmp.lt.s32.totalorder %s12, 2
    // Predicated region
    $region29: #{segmenter_forward.1} parent=5 // pred_check
      %p176 = pneg %p175
    $region30: #{segmenter_forward.1} parent=5 // pred_check_branch
      %178 = sbr.rel (%p176) target = $region32
    $region31: #{segmenter_forward.1} parent=5 // pred_region
      _
    $region32: #{segmenter_forward.1} parent=5 // pred_fallthru
      _
    %p179 = scmp.le.s32.totalorder 1, %s12
    %p180 = scmp.lt.s32.totalorder %s12, 3
    %p181 = pnand %p179, %p180
    %p182 = pneg %p181
    // Predicated region
    $region33: #{segmenter_forward.1} parent=5 // pred_check
      _
    $region34: #{segmenter_forward.1} parent=5 // pred_check_branch
      %184 = sbr.rel (%p181) target = $region36
    $region35: #{segmenter_forward.1} parent=5 // pred_region
      %s185 = ssub.s32 %s12, 1
      %p186 = pneg %p33
      %p187 = pneg %p30
      %p188 = pneg %p54
      %p189 = pneg %p51
      %p190 = pneg %p75
      %p191 = pneg %p72
      %p192 = pneg %p96
      %p193 = pneg %p93
      %p194 = pneg %p122
      %p195 = pneg %p119
      %p196 = scmp.lt.s32.totalorder %s17, 1
      %s197 = scalar_select %p196, %s17, 1
      %s198 = smul.addr %s197, 8
      %s199 = scalar_lea.vmem %s4, %s198
      %p200 = pneg %p148
      %p201 = pneg %p145
      %p202 = scmp.lt.s32.totalorder %s17, 1
      %s203 = scalar_select %p202, %s17, 1
      %s204 = smul.addr %s203, 10
      %s205 = smul.addr %s204, 8
      %s206 = scalar_lea.vmem %s5, %s205
      %p207 = scmp.lt.s32.totalorder %s17, 1
      %s208 = scalar_select %p207, %s17, 1
      %s209 = smul.addr %s208, 8
      %s210 = scalar_lea.vmem %s4, %s209
      %p211 = scmp.lt.s32.totalorder %s17, 1
      %s212 = scalar_select %p211, %s17, 1
      %s213 = smul.addr %s212, 10
      %s214 = smul.addr %s213, 8
      %s215 = scalar_lea.vmem %s5, %s214
      %p217 = scmp.eq.s32.totalorder %s17, 0
      // Predicated region
      $region37: #{segmenter_forward.1} parent=35 // pred_check
        %p218 = pneg %p217
      $region38: #{segmenter_forward.1} parent=35 // pred_check_branch
        %220 = sbr.rel (%p218) target = $region40
      $region39: #{segmenter_forward.1} parent=35 // pred_region
        %v221 = vld [vmem:[%s0] sm:$0xff]
        %v222 = vld [vmem:[%s0 + $0x8] sm:$0xff]
        %v223 = vsub.f32 %v221, 50.0
        %v224 = vsub.f32 %v222, 50.0
        %v225 = vmul.f32 %v223, 0.01
        %v226 = vmul.f32 %v224, 0.01
        %v227 = vpack.c.bf16 %v226, %v225
        %v228 = vld [vmem:[%s2] sm:$0xf]
        %v229 = vld [vmem:[%s2 + $0x4] sm:$0xf]
        %v230 = vld [vmem:[%s2 + $0x8] sm:$0xf]
        %v231 = vld [vmem:[%s2 + $0xc] sm:$0xf]
        %v232 = vld [vmem:[%s2 + $0x10] sm:$0xf]
        %v233 = vld [vmem:[%s2 + $0x14] sm:$0xf]
        %v234 = vld [vmem:[%s2 + $0x18] sm:$0xf]
        %v235 = vld [vmem:[%s2 + $0x1c] sm:$0xf]
        %v236 = vld [vmem:[%s1] sm:$0x1]
        %v237 = vlaneseq
        %v238 = vshrl.u32 %v237, 7
        %v239 = vsub.s32 0, %v238
        %v240 = vrot.slane %v236, %v239
        %v249 = vunpack.c.l.b16 %v228
        %v250 = vunpack.c.l.b16 %v229
        %v251 = vunpack.c.l.b16 %v230
        %v252 = vunpack.c.l.b16 %v231
        %v253 = vunpack.c.l.b16 %v232
        %v254 = vunpack.c.l.b16 %v233
        %v255 = vunpack.c.l.b16 %v234
        %v256 = vunpack.c.l.b16 %v235
        %v257 = vpack.c.b16 %v250, %v249
        %v258 = vpack.c.b16 %v252, %v251
        %v259 = vpack.c.b16 %v254, %v253
        %v260 = vpack.c.b16 %v256, %v255
        %vm265 = vcmask 523264
        %v267 = vsel %vm265, %v227, 0
        %269 = vmatprep.subr.bf16.mxu0 0
        %270 = vmatpush1.bf16.msra.mxu0 0
        %271 = vmatprep.subr.bf16.mxu0 0
        %272 = vmatpush1.bf16.msra.mxu0 0
        %273 = vmatprep.subr.bf16.mxu0 0
        %274 = vmatpush1.bf16.msra.mxu0 0
        %275 = vmatprep.subr.bf16.mxu0 0
        %276 = vmatpush1.bf16.msra.mxu0 0
        %277 = vmatprep.subr.bf16.mxu0 0
        %278 = vmatpush1.bf16.msra.mxu0 %v260
        %279 = vmatprep.subr.bf16.mxu0 0
        %280 = vmatpush1.bf16.msra.mxu0 %v259
        %281 = vmatprep.subr.bf16.mxu0 0
        %282 = vmatpush1.bf16.msra.mxu0 %v258
        %283 = vmatprep.subr.bf16.mxu0 0
        %284 = vmatpush1.bf16.msra.mxu0 %v257
        %285 = vmatprep.subr.bf16.mxu0 0
        %286 = vmatpush2.bf16.msra.mxu0 0
        %287 = vmatprep.subr.bf16.mxu0 0
        %288 = vmatpush2.bf16.msra.mxu0 0
        %289 = vmatprep.subr.bf16.mxu0 0
        %290 = vmatpush2.bf16.msra.mxu0 0
        %291 = vmatprep.subr.bf16.mxu0 0
        %292 = vmatpush2.bf16.msra.mxu0 0
        %293 = vmatprep.subr.bf16.mxu0 0
        %294 = vmatpush2.bf16.msra.mxu0 0
        %295 = vmatprep.subr.bf16.mxu0 0
        %296 = vmatpush2.bf16.msra.mxu0 0
        %297 = vmatprep.subr.bf16.mxu0 0
        %298 = vmatpush2.bf16.msra.mxu0 0
        %299 = vmatprep.subr.bf16.mxu0 0
        %300 = vmatpush2.bf16.msra.mxu0 0
        %301 = vmatprep.mubr.bf16.mxu0 0
        %302 = vmatmul.mubr.bf16.gmra.mxu0 %v267
        %v303 = vpop.f32.mrf.mxu0
        %v304 = vadd.f32 %v240, %v303
        %v305 = vpop.f32.mrf.mxu0
        %v306 = vpop.f32.mrf.mxu0
        %v307 = vadd.f32 %v240, %v306
        %v308 = vpop.f32.mrf.mxu0
        %309 = vdwg.mxu0
        %v310 = vld [vmem:[%s1 + $0x10] sm:$0xff]
        %v311 = vld [vmem:[%s1 + $0x18] sm:$0xff]
        %v312 = vadd.f32 %v304, %v310
        %v313 = vadd.f32 %v307, %v311
        %v314 = vld [vmem:[%s1 + $0x6] sm:$0x1]
        %v315 = vld [vmem:[%s1 + $0x7] sm:$0x1]
        %vm316 = vcmask 261120
        %v317 = vsel %vm316, %v312, 0.0
        %318 = vadd.xlane.f32.xlu0 %v317
        %v319 = vpop.xlane.xlu0 %318
        %v320 = vsel %vm316, %v313, 0.0
        %321 = vadd.xlane.f32.xlu0 %v320
        %v322 = vpop.xlane.xlu0 %321
        %v323 = vrcp.pop 32.0
        %v324 = vmul.f32 %v319, %v323
        %v325 = vmul.f32 %v322, %v323
        %v326 = vsub.f32 %v312, %v324
        %v327 = vsub.f32 %v313, %v325
        %v328 = vmul.f32 %v326, %v326
        %v329 = vmul.f32 %v327, %v327
        %v330 = vsel %vm316, %v328, 0.0
        %331 = vadd.xlane.f32.xlu0 %v330
        %v332 = vpop.xlane.xlu0 %331
        %v333 = vsel %vm316, %v329, 0.0
        %334 = vadd.xlane.f32.xlu0 %v333
        %v335 = vpop.xlane.xlu0 %334
        %v336 = vmul.f32 %v332, %v323
        %v337 = vmul.f32 %v335, %v323
        %v338 = vadd.f32 %v336, 1e-05
        %v339 = vadd.f32 %v337, 1e-05
        %v340 = vrsqrt.pop %v338
        %v341 = vrsqrt.pop %v339
        %v342 = vmul.f32 %v326, %v340
        %v343 = vmul.f32 %v327, %v341
        %v344 = vlaneseq
        %v345 = vshrl.u32 %v344, 7
        %v346 = vsub.s32 0, %v345
        %v347 = vrot.slane %v314, %v346
        %v348 = vmul.f32 %v342, %v347
        %v349 = vmul.f32 %v343, %v347
        %v350 = vlaneseq
        %v351 = vshrl.u32 %v350, 7
        %v352 = vsub.s32 0, %v351
        %v353 = vrot.slane %v315, %v352
        %v354 = vadd.f32 %v348, %v353
        %v355 = vadd.f32 %v349, %v353
        %v356 = vpack.c.bf16 %v355, %v354
        %v357 = vld [vmem:[%s2 + $0x20] sm:$0xf]
        %v358 = vld [vmem:[%s2 + $0x24] sm:$0xf]
        %v359 = vld [vmem:[%s2 + $0x28] sm:$0xf]
        %v360 = vld [vmem:[%s2 + $0x2c] sm:$0xf]
        %v361 = vld [vmem:[%s1 + $0x1] sm:$0x1]
        %v362 = vlaneseq
        %v363 = vshrl.u32 %v362, 7
        %v364 = vsub.s32 0, %v363
        %v365 = vrot.slane %v361, %v364
        %v370 = vunpack.c.l.b16 %v357
        %v371 = vunpack.c.l.b16 %v358
        %v372 = vunpack.c.l.b16 %v359
        %v373 = vunpack.c.l.b16 %v360
        %v374 = vpack.c.b16 %v371, %v370
        %v375 = vpack.c.b16 %v373, %v372
        %v379 = vsel %vm316, %v356, 0
        %381 = vmatprep.subr.bf16.mxu0 0
        %382 = vmatpush1.bf16.msra.mxu0 0
        %383 = vmatprep.subr.bf16.mxu0 0
        %384 = vmatpush1.bf16.msra.mxu0 0
        %385 = vmatprep.subr.bf16.mxu0 0
        %386 = vmatpush1.bf16.msra.mxu0 0
        %387 = vmatprep.subr.bf16.mxu0 0
        %388 = vmatpush1.bf16.msra.mxu0 0
        %389 = vmatprep.subr.bf16.mxu0 0
        %390 = vmatpush1.bf16.msra.mxu0 0
        %391 = vmatprep.subr.bf16.mxu0 0
        %392 = vmatpush1.bf16.msra.mxu0 0
        %393 = vmatprep.subr.bf16.mxu0 0
        %394 = vmatpush1.bf16.msra.mxu0 %v375
        %395 = vmatprep.subr.bf16.mxu0 0
        %396 = vmatpush1.bf16.msra.mxu0 %v374
        %397 = vmatprep.subr.bf16.mxu0 0
        %398 = vmatpush2.bf16.msra.mxu0 0
        %399 = vmatprep.subr.bf16.mxu0 0
        %400 = vmatpush2.bf16.msra.mxu0 0
        %401 = vmatprep.subr.bf16.mxu0 0
        %402 = vmatpush2.bf16.msra.mxu0 0
        %403 = vmatprep.subr.bf16.mxu0 0
        %404 = vmatpush2.bf16.msra.mxu0 0
        %405 = vmatprep.subr.bf16.mxu0 0
        %406 = vmatpush2.bf16.msra.mxu0 0
        %407 = vmatprep.subr.bf16.mxu0 0
        %408 = vmatpush2.bf16.msra.mxu0 0
        %409 = vmatprep.subr.bf16.mxu0 0
        %410 = vmatpush2.bf16.msra.mxu0 0
        %411 = vmatprep.subr.bf16.mxu0 0
        %412 = vmatpush2.bf16.msra.mxu0 0
        %413 = vmatprep.mubr.bf16.mxu0 0
        %414 = vmatmul.mubr.bf16.gmra.mxu0 %v379
        %v415 = vpop.f32.mrf.mxu0
        %v416 = vadd.f32 %v365, %v415
        %v417 = vpop.f32.mrf.mxu0
        %v418 = vpop.f32.mrf.mxu0
        %v419 = vadd.f32 %v365, %v418
        %v420 = vpop.f32.mrf.mxu0
        %421 = vdwg.mxu0
        %v422 = vpack.c.bf16 %v419, %v416
        %424 = vrot.lane.b32.xlu0 %v422, 96
        %v425 = vpop.permute.xlu0 %424
        %v427 = vsel %vm316, %v422, 0
        %v430 = vsel %vm316, %v425, 0
        %432 = vmatprep.subr.bf16.mxu0 0
        %433 = vmatpush1.bf16.xpose.msra.mxu0 0
        %434 = vmatprep.subr.bf16.mxu0 0
        %435 = vmatpush1.bf16.xpose.msra.mxu0 0
        %436 = vmatprep.subr.bf16.mxu0 0
        %437 = vmatpush1.bf16.xpose.msra.mxu0 0
        %438 = vmatprep.subr.bf16.mxu0 0
        %439 = vmatpush1.bf16.xpose.msra.mxu0 0
        %440 = vmatprep.subr.bf16.mxu0 0
        %441 = vmatpush1.bf16.xpose.msra.mxu0 0
        %442 = vmatprep.subr.bf16.mxu0 0
        %443 = vmatpush1.bf16.xpose.msra.mxu0 0
        %444 = vmatprep.subr.bf16.mxu0 0
        %445 = vmatpush1.bf16.xpose.msra.mxu0 0
        %446 = vmatprep.subr.bf16.mxu0 0
        %447 = vmatpush1.bf16.xpose.msra.mxu0 %v430
        %448 = vmatprep.subr.bf16.mxu0 0
        %449 = vmatpush2.bf16.xpose.msra.mxu0 0
        %450 = vmatprep.subr.bf16.mxu0 0
        %451 = vmatpush2.bf16.xpose.msra.mxu0 0
        %452 = vmatprep.subr.bf16.mxu0 0
        %453 = vmatpush2.bf16.xpose.msra.mxu0 0
        %454 = vmatprep.subr.bf16.mxu0 0
        %455 = vmatpush2.bf16.xpose.msra.mxu0 0
        %456 = vmatprep.subr.bf16.mxu0 0
        %457 = vmatpush2.bf16.xpose.msra.mxu0 0
        %458 = vmatprep.subr.bf16.mxu0 0
        %459 = vmatpush2.bf16.xpose.msra.mxu0 0
        %460 = vmatprep.subr.bf16.mxu0 0
        %461 = vmatpush2.bf16.xpose.msra.mxu0 0
        %462 = vmatprep.subr.bf16.mxu0 0
        %463 = vmatpush2.bf16.xpose.msra.mxu0 0
        %464 = vmatprep.mubr.bf16.mxu0 0
        %465 = vmatmul.mubr.bf16.gmra.mxu0 %v427
        %v466 = vpop.f32.mrf.mxu0
        %v467 = vadd.f32 0.0, %v466
        %v468 = vpop.f32.mrf.mxu0
        %v469 = vpop.f32.mrf.mxu0
        %v470 = vadd.f32 0.0, %v469
        %v471 = vpop.f32.mrf.mxu0
        %472 = vdwg.mxu0
        %v473 = vmul.f32 %v467, 0.17677669
        %v474 = vmul.f32 %v470, 0.17677669
        %v475 = vld [vmem:[%s1 + $0x20] sm:$0xff]
        %v476 = vld [vmem:[%s1 + $0x28] sm:$0xff]
        %v477 = vadd.f32 %v473, %v475
        %v478 = vadd.f32 %v474, %v476
        %vm479 = vcmask 130048
        %v480 = vsel %vm479, %v477, -inf
        %481 = vmax.xlane.f32.xlu0 %v480
        %v482 = vpop.xlane.xlu0 %481
        %v483 = vsel %vm479, %v478, -inf
        %484 = vmax.xlane.f32.xlu0 %v483
        %v485 = vpop.xlane.xlu0 %484
        %v486 = vsub.f32 %v477, %v482
        %v487 = vsub.f32 %v478, %v485
        %v488 = vmul.f32 %v486, 1.442695
        %v489 = vpow.pop %v488
        %v490 = vmul.f32 %v487, 1.442695
        %v491 = vpow.pop %v490
        %v492 = vsel %vm479, %v489, 0.0
        %493 = vadd.xlane.f32.xlu0 %v492
        %v494 = vpop.xlane.xlu0 %493
        %v495 = vsel %vm479, %v491, 0.0
        %496 = vadd.xlane.f32.xlu0 %v495
        %v497 = vpop.xlane.xlu0 %496
        %v498 = vrcp.pop %v494
        %v499 = vmul.f32 %v489, %v498
        %v500 = vrcp.pop %v497
        %v501 = vmul.f32 %v491, %v500
        %v502 = vpack.c.bf16 %v501, %v499
        %503 = vrot.lane.b32.xlu0 %v422, 64
        %v504 = vpop.permute.xlu0 %503
        %v507 = vsel %vm479, %v502, 0
        %509 = vmatprep.subr.bf16.mxu0 0
        %510 = vmatpush1.bf16.msra.mxu0 0
        %511 = vmatprep.subr.bf16.mxu0 0
        %512 = vmatpush1.bf16.msra.mxu0 0
        %513 = vmatprep.subr.bf16.mxu0 0
        %514 = vmatpush1.bf16.msra.mxu0 0
        %515 = vmatprep.subr.bf16.mxu0 0
        %516 = vmatpush1.bf16.msra.mxu0 0
        %517 = vmatprep.subr.bf16.mxu0 0
        %518 = vmatpush1.bf16.msra.mxu0 0
        %519 = vmatprep.subr.bf16.mxu0 0
        %520 = vmatpush1.bf16.msra.mxu0 0
        %521 = vmatprep.subr.bf16.mxu0 0
        %522 = vmatpush1.bf16.msra.mxu0 0
        %523 = vmatprep.subr.bf16.mxu0 0
        %524 = vmatpush1.bf16.msra.mxu0 %v504
        %525 = vmatprep.subr.bf16.mxu0 0
        %526 = vmatpush2.bf16.msra.mxu0 0
        %527 = vmatprep.subr.bf16.mxu0 0
        %528 = vmatpush2.bf16.msra.mxu0 0
        %529 = vmatprep.subr.bf16.mxu0 0
        %530 = vmatpush2.bf16.msra.mxu0 0
        %531 = vmatprep.subr.bf16.mxu0 0
        %532 = vmatpush2.bf16.msra.mxu0 0
        %533 = vmatprep.subr.bf16.mxu0 0
        %534 = vmatpush2.bf16.msra.mxu0 0
        %535 = vmatprep.subr.bf16.mxu0 0
        %536 = vmatpush2.bf16.msra.mxu0 0
        %537 = vmatprep.subr.bf16.mxu0 0
        %538 = vmatpush2.bf16.msra.mxu0 0
        %539 = vmatprep.subr.bf16.mxu0 0
        %540 = vmatpush2.bf16.msra.mxu0 0
        %541 = vmatprep.mubr.bf16.mxu0 0
        %542 = vmatmul.mubr.bf16.gmra.mxu0 %v507
        %v543 = vpop.f32.mrf.mxu0
        %v544 = vadd.f32 0.0, %v543
        %v545 = vpop.f32.mrf.mxu0
        %v546 = vpop.f32.mrf.mxu0
        %v547 = vadd.f32 0.0, %v546
        %v548 = vpop.f32.mrf.mxu0
        %549 = vdwg.mxu0
        %v550 = vpack.c.bf16 %v547, %v544
        %v551 = vld [vmem:[%s2 + $0x30] sm:$0xf]
        %v552 = vld [vmem:[%s2 + $0x34] sm:$0xf]
        %v553 = vld [vmem:[%s2 + $0x38] sm:$0xf]
        %v554 = vld [vmem:[%s2 + $0x3c] sm:$0xf]
        %v559 = vunpack.c.l.b16 %v551
        %v560 = vunpack.c.l.b16 %v552
        %v561 = vunpack.c.l.b16 %v553
        %v562 = vunpack.c.l.b16 %v554
        %v563 = vpack.c.b16 %v560, %v559
        %v564 = vpack.c.b16 %v562, %v561
        %v568 = vsel %vm316, %v550, 0
        %570 = vmatprep.subr.bf16.mxu0 0
        %571 = vmatpush1.bf16.msra.mxu0 0
        %572 = vmatprep.subr.bf16.mxu0 0
        %573 = vmatpush1.bf16.msra.mxu0 0
        %574 = vmatprep.subr.bf16.mxu0 0
        %575 = vmatpush1.bf16.msra.mxu0 0
        %576 = vmatprep.subr.bf16.mxu0 0
        %577 = vmatpush1.bf16.msra.mxu0 0
        %578 = vmatprep.subr.bf16.mxu0 0
        %579 = vmatpush1.bf16.msra.mxu0 0
        %580 = vmatprep.subr.bf16.mxu0 0
        %581 = vmatpush1.bf16.msra.mxu0 0
        %582 = vmatprep.subr.bf16.mxu0 0
        %583 = vmatpush1.bf16.msra.mxu0 %v564
        %584 = vmatprep.subr.bf16.mxu0 0
        %585 = vmatpush1.bf16.msra.mxu0 %v563
        %586 = vmatprep.subr.bf16.mxu0 0
        %587 = vmatpush2.bf16.msra.mxu0 0
        %588 = vmatprep.subr.bf16.mxu0 0
        %589 = vmatpush2.bf16.msra.mxu0 0
        %590 = vmatprep.subr.bf16.mxu0 0
        %591 = vmatpush2.bf16.msra.mxu0 0
        %592 = vmatprep.subr.bf16.mxu0 0
        %593 = vmatpush2.bf16.msra.mxu0 0
        %594 = vmatprep.subr.bf16.mxu0 0
        %595 = vmatpush2.bf16.msra.mxu0 0
        %596 = vmatprep.subr.bf16.mxu0 0
        %597 = vmatpush2.bf16.msra.mxu0 0
        %598 = vmatprep.subr.bf16.mxu0 0
        %599 = vmatpush2.bf16.msra.mxu0 0
        %600 = vmatprep.subr.bf16.mxu0 0
        %601 = vmatpush2.bf16.msra.mxu0 0
        %602 = vmatprep.mubr.bf16.mxu0 0
        %603 = vmatmul.mubr.bf16.gmra.mxu0 %v568
        %v604 = vpop.f32.mrf.mxu0
        %v605 = vadd.f32 0.0, %v604
        %v606 = vpop.f32.mrf.mxu0
        %v607 = vpop.f32.mrf.mxu0
        %v608 = vadd.f32 0.0, %v607
        %v609 = vpop.f32.mrf.mxu0
        %610 = vdwg.mxu0
        %v611 = vadd.f32 %v312, %v605
        %v612 = vadd.f32 %v313, %v608
        %v613 = vld [vmem:[%s1 + $0x2] sm:$0x1]
        %v614 = vlaneseq
        %v615 = vshrl.u32 %v614, 7
        %v616 = vsub.s32 0, %v615
        %v617 = vrot.slane %v613, %v616
        %v618 = vadd.f32 %v611, %v617
        %v619 = vadd.f32 %v612, %v617
        %v620 = vld [vmem:[%s1 + $0x8] sm:$0x1]
        %v621 = vld [vmem:[%s1 + $0x9] sm:$0x1]
        %v622 = vsel %vm316, %v618, 0.0
        %623 = vadd.xlane.f32.xlu0 %v622
        %v624 = vpop.xlane.xlu0 %623
        %v625 = vsel %vm316, %v619, 0.0
        %626 = vadd.xlane.f32.xlu0 %v625
        %v627 = vpop.xlane.xlu0 %626
        %v628 = vmul.f32 %v624, %v323
        %v629 = vmul.f32 %v627, %v323
        %v630 = vsub.f32 %v618, %v628
        %v631 = vsub.f32 %v619, %v629
        %v632 = vmul.f32 %v630, %v630
        %v633 = vmul.f32 %v631, %v631
        %v634 = vsel %vm316, %v632, 0.0
        %635 = vadd.xlane.f32.xlu0 %v634
        %v636 = vpop.xlane.xlu0 %635
        %v637 = vsel %vm316, %v633, 0.0
        %638 = vadd.xlane.f32.xlu0 %v637
        %v639 = vpop.xlane.xlu0 %638
        %v640 = vmul.f32 %v636, %v323
        %v641 = vmul.f32 %v639, %v323
        %v642 = vadd.f32 %v640, 1e-05
        %v643 = vadd.f32 %v641, 1e-05
        %v644 = vrsqrt.pop %v642
        %v645 = vrsqrt.pop %v643
        %v646 = vmul.f32 %v630, %v644
        %v647 = vmul.f32 %v631, %v645
        %v648 = vlaneseq
        %v649 = vshrl.u32 %v648, 7
        %v650 = vsub.s32 0, %v649
        %v651 = vrot.slane %v620, %v650
        %v652 = vmul.f32 %v646, %v651
        %v653 = vmul.f32 %v647, %v651
        %v654 = vlaneseq
        %v655 = vshrl.u32 %v654, 7
        %v656 = vsub.s32 0, %v655
        %v657 = vrot.slane %v621, %v656
        %v658 = vadd.f32 %v652, %v657
        %v659 = vadd.f32 %v653, %v657
        %v660 = vpack.c.bf16 %v659, %v658
        %v661 = vld [vmem:[%s2 + $0x40] sm:$0xf]
        %v662 = vld [vmem:[%s2 + $0x44] sm:$0xf]
        %v663 = vld [vmem:[%s2 + $0x48] sm:$0xf]
        %v664 = vld [vmem:[%s2 + $0x4c] sm:$0xf]
        %v665 = vld [vmem:[%s1 + $0x3] sm:$0x1]
        %v666 = vlaneseq
        %v667 = vshrl.u32 %v666, 7
        %v668 = vsub.s32 0, %v667
        %v669 = vrot.slane %v665, %v668
        %v674 = vunpack.c.l.b16 %v661
        %v675 = vunpack.c.l.b16 %v662
        %v676 = vunpack.c.l.b16 %v663
        %v677 = vunpack.c.l.b16 %v664
        %v678 = vpack.c.b16 %v675, %v674
        %v679 = vpack.c.b16 %v677, %v676
        %v683 = vsel %vm316, %v660, 0
        %685 = vmatprep.subr.bf16.mxu0 0
        %686 = vmatpush1.bf16.msra.mxu0 0
        %687 = vmatprep.subr.bf16.mxu0 0
        %688 = vmatpush1.bf16.msra.mxu0 0
        %689 = vmatprep.subr.bf16.mxu0 0
        %690 = vmatpush1.bf16.msra.mxu0 0
        %691 = vmatprep.subr.bf16.mxu0 0
        %692 = vmatpush1.bf16.msra.mxu0 0
        %693 = vmatprep.subr.bf16.mxu0 0
        %694 = vmatpush1.bf16.msra.mxu0 0
        %695 = vmatprep.subr.bf16.mxu0 0
        %696 = vmatpush1.bf16.msra.mxu0 0
        %697 = vmatprep.subr.bf16.mxu0 0
        %698 = vmatpush1.bf16.msra.mxu0 %v679
        %699 = vmatprep.subr.bf16.mxu0 0
        %700 = vmatpush1.bf16.msra.mxu0 %v678
        %701 = vmatprep.subr.bf16.mxu0 0
        %702 = vmatpush2.bf16.msra.mxu0 0
        %703 = vmatprep.subr.bf16.mxu0 0
        %704 = vmatpush2.bf16.msra.mxu0 0
        %705 = vmatprep.subr.bf16.mxu0 0
        %706 = vmatpush2.bf16.msra.mxu0 0
        %707 = vmatprep.subr.bf16.mxu0 0
        %708 = vmatpush2.bf16.msra.mxu0 0
        %709 = vmatprep.subr.bf16.mxu0 0
        %710 = vmatpush2.bf16.msra.mxu0 0
        %711 = vmatprep.subr.bf16.mxu0 0
        %712 = vmatpush2.bf16.msra.mxu0 0
        %713 = vmatprep.subr.bf16.mxu0 0
        %714 = vmatpush2.bf16.msra.mxu0 0
        %715 = vmatprep.subr.bf16.mxu0 0
        %716 = vmatpush2.bf16.msra.mxu0 0
        %717 = vmatprep.mubr.bf16.mxu0 0
        %718 = vmatmul.mubr.bf16.gmra.mxu0 %v683
        %v719 = vpop.f32.mrf.mxu0
        %v720 = vadd.f32 %v669, %v719
        %v721 = vpop.f32.mrf.mxu0
        %v722 = vpop.f32.mrf.mxu0
        %v723 = vadd.f32 %v669, %v722
        %v724 = vpop.f32.mrf.mxu0
        %725 = vdwg.mxu0
        %v726 = vmul.f32 %v720, %v720
        %v727 = vmul.f32 %v723, %v723
        %v728 = vmul.f32 %v720, %v726
        %v729 = vmul.f32 %v723, %v727
        %v730 = vmul.f32 %v728, 0.044715
        %v731 = vmul.f32 %v729, 0.044715
        %v732 = vadd.f32 %v720, %v730
        %v733 = vadd.f32 %v723, %v731
        %v734 = vmul.f32 %v732, 0.7978846
        %v735 = vmul.f32 %v733, 0.7978846
        %v736 = vtanh.pop %v734
        %v737 = vtanh.pop %v735
        %v738 = vadd.f32 %v736, 1.0
        %v739 = vadd.f32 %v737, 1.0
        %v740 = vmul.f32 %v738, 0.5
        %v741 = vmul.f32 %v739, 0.5
        %v742 = vmul.f32 %v720, %v740
        %v743 = vmul.f32 %v723, %v741
        %v744 = vpack.c.bf16 %v743, %v742
        %v745 = vld [vmem:[%s2 + $0x50] sm:$0xf]
        %v746 = vld [vmem:[%s2 + $0x54] sm:$0xf]
        %v747 = vld [vmem:[%s2 + $0x58] sm:$0xf]
        %v748 = vld [vmem:[%s2 + $0x5c] sm:$0xf]
        %v749 = vld [vmem:[%s2 + $0x60] sm:$0xf]
        %v750 = vld [vmem:[%s2 + $0x64] sm:$0xf]
        %v751 = vld [vmem:[%s2 + $0x68] sm:$0xf]
        %v752 = vld [vmem:[%s2 + $0x6c] sm:$0xf]
        %v753 = vld [vmem:[%s2 + $0x70] sm:$0xf]
        %v754 = vld [vmem:[%s2 + $0x74] sm:$0xf]
        %v755 = vld [vmem:[%s2 + $0x78] sm:$0xf]
        %v756 = vld [vmem:[%s2 + $0x7c] sm:$0xf]
        %v757 = vld [vmem:[%s2 + $0x80] sm:$0xf]
        %v758 = vld [vmem:[%s2 + $0x84] sm:$0xf]
        %v759 = vld [vmem:[%s2 + $0x88] sm:$0xf]
        %v760 = vld [vmem:[%s2 + $0x8c] sm:$0xf]
        %v777 = vunpack.c.l.b16 %v745
        %v778 = vunpack.c.l.b16 %v746
        %v779 = vunpack.c.l.b16 %v747
        %v780 = vunpack.c.l.b16 %v748
        %v781 = vunpack.c.l.b16 %v749
        %v782 = vunpack.c.l.b16 %v750
        %v783 = vunpack.c.l.b16 %v751
        %v784 = vunpack.c.l.b16 %v752
        %v785 = vunpack.c.l.b16 %v753
        %v786 = vunpack.c.l.b16 %v754
        %v787 = vunpack.c.l.b16 %v755
        %v788 = vunpack.c.l.b16 %v756
        %v789 = vunpack.c.l.b16 %v757
        %v790 = vunpack.c.l.b16 %v758
        %v791 = vunpack.c.l.b16 %v759
        %v792 = vunpack.c.l.b16 %v760
        %v793 = vpack.c.b16 %v778, %v777
        %v794 = vpack.c.b16 %v780, %v779
        %v795 = vpack.c.b16 %v782, %v781
        %v796 = vpack.c.b16 %v784, %v783
        %v797 = vpack.c.b16 %v786, %v785
        %v798 = vpack.c.b16 %v788, %v787
        %v799 = vpack.c.b16 %v790, %v789
        %v800 = vpack.c.b16 %v792, %v791
        %809 = vmatprep.subr.bf16.mxu0 0
        %810 = vmatpush1.bf16.msra.mxu0 %v800
        %811 = vmatprep.subr.bf16.mxu0 0
        %812 = vmatpush1.bf16.msra.mxu0 %v799
        %813 = vmatprep.subr.bf16.mxu0 0
        %814 = vmatpush1.bf16.msra.mxu0 %v798
        %815 = vmatprep.subr.bf16.mxu0 0
        %816 = vmatpush1.bf16.msra.mxu0 %v797
        %817 = vmatprep.subr.bf16.mxu0 0
        %818 = vmatpush1.bf16.msra.mxu0 %v796
        %819 = vmatprep.subr.bf16.mxu0 0
        %820 = vmatpush1.bf16.msra.mxu0 %v795
        %821 = vmatprep.subr.bf16.mxu0 0
        %822 = vmatpush1.bf16.msra.mxu0 %v794
        %823 = vmatprep.subr.bf16.mxu0 0
        %824 = vmatpush1.bf16.msra.mxu0 %v793
        %825 = vmatprep.subr.bf16.mxu0 0
        %826 = vmatpush2.bf16.msra.mxu0 0
        %827 = vmatprep.subr.bf16.mxu0 0
        %828 = vmatpush2.bf16.msra.mxu0 0
        %829 = vmatprep.subr.bf16.mxu0 0
        %830 = vmatpush2.bf16.msra.mxu0 0
        %831 = vmatprep.subr.bf16.mxu0 0
        %832 = vmatpush2.bf16.msra.mxu0 0
        %833 = vmatprep.subr.bf16.mxu0 0
        %834 = vmatpush2.bf16.msra.mxu0 0
        %835 = vmatprep.subr.bf16.mxu0 0
        %836 = vmatpush2.bf16.msra.mxu0 0
        %837 = vmatprep.subr.bf16.mxu0 0
        %838 = vmatpush2.bf16.msra.mxu0 0
        %839 = vmatprep.subr.bf16.mxu0 0
        %840 = vmatpush2.bf16.msra.mxu0 0
        %841 = vmatprep.mubr.bf16.mxu0 0
        %842 = vmatmul.mubr.bf16.gmra.mxu0 %v744
        %v843 = vpop.f32.mrf.mxu0
        %v844 = vadd.f32 0.0, %v843
        %v845 = vpop.f32.mrf.mxu0
        %v846 = vpop.f32.mrf.mxu0
        %v847 = vpop.f32.mrf.mxu0
        %848 = vdwg.mxu0
        %v849 = vadd.f32 %v618, %v844
        %v850 = vld [vmem:[%s1 + $0x4] sm:$0x1]
        %v851 = vlaneseq
        %v852 = vshrl.u32 %v851, 7
        %v853 = vsub.s32 0, %v852
        %v854 = vrot.slane %v850, %v853
        %v855 = vadd.f32 %v849, %v854
        %v856 = vpack.c.bf16 %v855, %v855
        %v857 = vld [vmem:[%s2 + $0x90] sm:$0xf]
        %v858 = vld [vmem:[%s2 + $0x94] sm:$0xf]
        %v859 = vld [vmem:[%s2 + $0x98] sm:$0xf]
        %v860 = vld [vmem:[%s2 + $0x9c] sm:$0xf]
        %v861 = vld [vmem:[%s1 + $0x5] sm:$0x1]
        %v862 = vlaneseq
        %v863 = vshrl.u32 %v862, 7
        %v864 = vsub.s32 0, %v863
        %v865 = vrot.slane %v861, %v864
        %v870 = vunpack.c.l.b16 %v857
        %v871 = vunpack.c.l.b16 %v858
        %v872 = vunpack.c.l.b16 %v859
        %v873 = vunpack.c.l.b16 %v860
        %v874 = vpack.c.b16 %v871, %v870
        %v875 = vpack.c.b16 %v873, %v872
        %v879 = vsel %vm316, %v856, 0
        %881 = vmatprep.subr.bf16.mxu0 0
        %882 = vmatpush1.bf16.msra.mxu0 0
        %883 = vmatprep.subr.bf16.mxu0 0
        %884 = vmatpush1.bf16.msra.mxu0 0
        %885 = vmatprep.subr.bf16.mxu0 0
        %886 = vmatpush1.bf16.msra.mxu0 0
        %887 = vmatprep.subr.bf16.mxu0 0
        %888 = vmatpush1.bf16.msra.mxu0 0
        %889 = vmatprep.subr.bf16.mxu0 0
        %890 = vmatpush1.bf16.msra.mxu0 0
        %891 = vmatprep.subr.bf16.mxu0 0
        %892 = vmatpush1.bf16.msra.mxu0 0
        %893 = vmatprep.subr.bf16.mxu0 0
        %894 = vmatpush1.bf16.msra.mxu0 %v875
        %895 = vmatprep.subr.bf16.mxu0 0
        %896 = vmatpush1.bf16.msra.mxu0 %v874
        %897 = vmatprep.subr.bf16.mxu0 0
        %898 = vmatpush2.bf16.msra.mxu0 0
        %899 = vmatprep.subr.bf16.mxu0 0
        %900 = vmatpush2.bf16.msra.mxu0 0
        %901 = vmatprep.subr.bf16.mxu0 0
        %902 = vmatpush2.bf16.msra.mxu0 0
        %903 = vmatprep.subr.bf16.mxu0 0
        %904 = vmatpush2.bf16.msra.mxu0 0
        %905 = vmatprep.subr.bf16.mxu0 0
        %906 = vmatpush2.bf16.msra.mxu0 0
        %907 = vmatprep.subr.bf16.mxu0 0
        %908 = vmatpush2.bf16.msra.mxu0 0
        %909 = vmatprep.subr.bf16.mxu0 0
        %910 = vmatpush2.bf16.msra.mxu0 0
        %911 = vmatprep.subr.bf16.mxu0 0
        %912 = vmatpush2.bf16.msra.mxu0 0
        %913 = vmatprep.mubr.bf16.mxu0 0
        %914 = vmatmul.mubr.bf16.gmra.mxu0 %v879
        %v915 = vpop.f32.mrf.mxu0
        %v916 = vadd.f32 %v865, %v915
        %v917 = vpop.f32.mrf.mxu0
        %v918 = vpop.f32.mrf.mxu0
        %v919 = vpop.f32.mrf.mxu0
        %920 = vdwg.mxu0
        %v921 = vmul.f32 %v916, 2.631579
        %v922 = vsel %vm479, %v921, -inf
        %923 = vmax.xlane.f32.xlu0 %v922
        %v924 = vpop.xlane.xlu0 %923
        %v925 = vsub.f32 %v921, %v924
        %v926 = vmul.f32 %v925, 1.442695
        %v927 = vpow.pop %v926
        %v928 = vsel %vm479, %v927, 0.0
        %929 = vadd.xlane.f32.xlu0 %v928
        %v930 = vpop.xlane.xlu0 %929
        %v931 = vrcp.pop %v930
        %v932 = vmul.f32 %v927, %v931
        %v933 = vld [vmem:[%s1 + $0xa] sm:$0x1]
        %v934 = vld [vmem:[%s1 + $0xb] sm:$0x1]
        %v935 = vlaneseq
        %v936 = vshrl.u32 %v935, 7
        %v937 = vsub.s32 0, %v936
        %v938 = vrot.slane %v933, %v937
        %v939 = vmul.f32 %v932, %v938
        %v940 = vsel %vm479, %v939, 0.0
        %941 = vadd.xlane.f32.xlu0 %v940
        %v942 = vpop.xlane.xlu0 %941
        %v943 = vlaneseq
        %v944 = vshrl.u32 %v943, 7
        %v945 = vsub.s32 0, %v944
        %v946 = vrot.slane %v934, %v945
        %v947 = vmul.f32 %v932, %v946
        %v948 = vsel %vm479, %v947, 0.0
        %949 = vadd.xlane.f32.xlu0 %v948
        %v950 = vpop.xlane.xlu0 %949
        %952 = vrot.lane.b32.xlu0 %v916, 32
        %v953 = vpop.permute.xlu0 %952
        %v955 = vsel %vm316, %v855, %v953
        %vm956 = vcmask 392192
        %v957 = vsel %vm956, %v955, %v942
        %vm958 = vcmask 400384
        %v959 = vsel %vm958, %v957, %v950
        %vm960 = vcmask 408576
        %v961 = vsel %vm960, %v959, 0.0
        %962 = vst [vmem:[%s210] sm:$0xff] %v961
      $region40: #{segmenter_forward.1} parent=35 // pred_fallthru
        _
      %p963 = scmp.eq.s32.totalorder %s17, 1
      // Predicated region
      $region41: #{segmenter_forward.1} parent=35 // pred_check
        %p964 = pneg %p963
      $region42: #{segmenter_forward.1} parent=35 // pred_check_branch
        %966 = sbr.rel (%p964) target = $region44
      $region43: #{segmenter_forward.1} parent=35 // pred_region
        %v967 = vld [vmem:[%s3] sm:$0xff]
        %v970 = vunpack.c.l.s4 1983009808
        %v971 = vunpack.c.0.s8 %v970
        %v972 = vlaneseq
        %v973 = vshrl.u32 %v972, 7
        %v974 = vsub.s32 %v971, %v973
        %v975 = vrot.slane %v967, %v974
        %v976 = vcombine.high %v975, %v975
        %v977 = vld [vmem:[%s1 + $0x30] sm:$0xff]
        %v978 = vld [vmem:[%s1 + $0x38] sm:$0xff]
        %v979 = vlaneseq
        %v980 = vshrl.u32 %v979, 7
        %v981 = vsub.s32 0, %v980
        %v982 = vrot.slane %v975, %v981
        %v983 = vlaneseq
        %v984 = vshrl.u32 %v983, 7
        %v985 = vsub.s32 2, %v984
        %v986 = vrot.slane %v975, %v985
        %v987 = vlaneseq
        %v988 = vshrl.u32 %v987, 7
        %v989 = vsub.s32 0, %v988
        %v990 = vrot.slane %v976, %v989
        %v991 = vlaneseq
        %v992 = vshrl.u32 %v991, 7
        %v993 = vsub.s32 2, %v992
        %v994 = vrot.slane %v976, %v993
        %v999 = vlaneseq
        %v1000 = vshrl.u32 %v999, 7
        %v1001 = vsub.s32 0, %v1000
        %v1002 = vrot.slane %v982, %v1001
        %v1003 = vlaneseq
        %v1004 = vshrl.u32 %v1003, 7
        %v1005 = vsub.s32 0, %v1004
        %v1006 = vrot.slane %v986, %v1005
        %v1007 = vlaneseq
        %v1008 = vshrl.u32 %v1007, 7
        %v1009 = vsub.s32 0, %v1008
        %v1010 = vrot.slane %v990, %v1009
        %v1011 = vlaneseq
        %v1012 = vshrl.u32 %v1011, 7
        %v1013 = vsub.s32 0, %v1012
        %v1014 = vrot.slane %v994, %v1013
        %1016 = vset.pattern.permute.xlu0 0
        %1017 = vperm.xlu0 %1016, %v977
        %v1018 = vpop.permute.xlu0 %1017
        %1021 = vset.pattern.permute.xlu0 0
        %1022 = vperm.xlu0 %1021, %v978
        %v1023 = vpop.permute.xlu0 %1022
        %v1025 = vsub.f32 %v1002, %v1018
        %v1026 = vsub.f32 %v1006, %v1018
        %v1027 = vsub.f32 %v1002, %v1023
        %v1028 = vsub.f32 %v1006, %v1023
        %v1029 = vsub.f32 %v1010, %v1018
        %v1030 = vsub.f32 %v1014, %v1018
        %v1031 = vsub.f32 %v1010, %v1023
        %v1032 = vsub.f32 %v1014, %v1023
        %v1033 = vmul.f32 %v1025, %v1025
        %v1034 = vmul.f32 %v1026, %v1026
        %v1035 = vmul.f32 %v1027, %v1027
        %v1036 = vmul.f32 %v1028, %v1028
        %v1037 = vmul.f32 %v1029, %v1029
        %v1038 = vmul.f32 %v1030, %v1030
        %v1039 = vmul.f32 %v1031, %v1031
        %v1040 = vmul.f32 %v1032, %v1032
        %v1041 = vlaneseq
        %v1042 = vshrl.u32 %v1041, 7
        %v1043 = vsub.s32 1, %v1042
        %v1044 = vrot.slane %v975, %v1043
        %v1045 = vlaneseq
        %v1046 = vshrl.u32 %v1045, 7
        %v1047 = vsub.s32 3, %v1046
        %v1048 = vrot.slane %v975, %v1047
        %v1049 = vlaneseq
        %v1050 = vshrl.u32 %v1049, 7
        %v1051 = vsub.s32 1, %v1050
        %v1052 = vrot.slane %v976, %v1051
        %v1053 = vlaneseq
        %v1054 = vshrl.u32 %v1053, 7
        %v1055 = vsub.s32 3, %v1054
        %v1056 = vrot.slane %v976, %v1055
        %v1061 = vlaneseq
        %v1062 = vshrl.u32 %v1061, 7
        %v1063 = vsub.s32 1, %v1062
        %v1064 = vrot.slane %v1044, %v1063
        %v1065 = vlaneseq
        %v1066 = vshrl.u32 %v1065, 7
        %v1067 = vsub.s32 1, %v1066
        %v1068 = vrot.slane %v1048, %v1067
        %v1069 = vlaneseq
        %v1070 = vshrl.u32 %v1069, 7
        %v1071 = vsub.s32 1, %v1070
        %v1072 = vrot.slane %v1052, %v1071
        %v1073 = vlaneseq
        %v1074 = vshrl.u32 %v1073, 7
        %v1075 = vsub.s32 1, %v1074
        %v1076 = vrot.slane %v1056, %v1075
        %1077 = vset.pattern.permute.xlu0 1
        %1078 = vperm.xlu0 %1077, %v977
        %v1079 = vpop.permute.xlu0 %1078
        %1081 = vset.pattern.permute.xlu0 1
        %1082 = vperm.xlu0 %1081, %v978
        %v1083 = vpop.permute.xlu0 %1082
        %v1085 = vsub.f32 %v1064, %v1079
        %v1086 = vsub.f32 %v1068, %v1079
        %v1087 = vsub.f32 %v1064, %v1083
        %v1088 = vsub.f32 %v1068, %v1083
        %v1089 = vsub.f32 %v1072, %v1079
        %v1090 = vsub.f32 %v1076, %v1079
        %v1091 = vsub.f32 %v1072, %v1083
        %v1092 = vsub.f32 %v1076, %v1083
        %v1093 = vmul.f32 %v1085, %v1085
        %v1094 = vmul.f32 %v1086, %v1086
        %v1095 = vmul.f32 %v1087, %v1087
        %v1096 = vmul.f32 %v1088, %v1088
        %v1097 = vmul.f32 %v1089, %v1089
        %v1098 = vmul.f32 %v1090, %v1090
        %v1099 = vmul.f32 %v1091, %v1091
        %v1100 = vmul.f32 %v1092, %v1092
        %v1101 = vadd.f32 %v1033, %v1093
        %v1102 = vadd.f32 %v1034, %v1094
        %v1103 = vadd.f32 %v1035, %v1095
        %v1104 = vadd.f32 %v1036, %v1096
        %v1105 = vadd.f32 %v1037, %v1097
        %v1106 = vadd.f32 %v1038, %v1098
        %v1107 = vadd.f32 %v1039, %v1099
        %v1108 = vadd.f32 %v1040, %v1100
        %v1109 = vmul.f32 %v1101, -0.02
        %v1110 = vmul.f32 %v1102, -0.02
        %v1111 = vmul.f32 %v1103, -0.02
        %v1112 = vmul.f32 %v1104, -0.02
        %v1113 = vmul.f32 %v1105, -0.02
        %v1114 = vmul.f32 %v1106, -0.02
        %v1115 = vmul.f32 %v1107, -0.02
        %v1116 = vmul.f32 %v1108, -0.02
        %v1117 = vmul.f32 %v1109, 1.442695
        %v1118 = vpow.pop %v1117
        %v1119 = vmul.f32 %v1110, 1.442695
        %v1120 = vpow.pop %v1119
        %v1121 = vmul.f32 %v1111, 1.442695
        %v1122 = vpow.pop %v1121
        %v1123 = vmul.f32 %v1112, 1.442695
        %v1124 = vpow.pop %v1123
        %v1125 = vmul.f32 %v1113, 1.442695
        %v1126 = vpow.pop %v1125
        %v1127 = vmul.f32 %v1114, 1.442695
        %v1128 = vpow.pop %v1127
        %v1129 = vmul.f32 %v1115, 1.442695
        %v1130 = vpow.pop %v1129
        %v1131 = vmul.f32 %v1116, 1.442695
        %v1132 = vpow.pop %v1131
        %v1133 = vadd.f32 %v1118, %v1122
        %v1134 = vrot.slane %v1133, 4
        %v1135 = vadd.f32 %v1133, %v1134
        %v1136 = vrot.slane %v1135, 2
        %v1137 = vadd.f32 %v1135, %v1136
        %v1138 = vrot.slane %v1137, 1
        %v1139 = vadd.f32 %v1137, %v1138
        %v1140 = vadd.f32 %v1120, %v1124
        %v1141 = vrot.slane %v1140, 4
        %v1142 = vadd.f32 %v1140, %v1141
        %v1143 = vrot.slane %v1142, 2
        %v1144 = vadd.f32 %v1142, %v1143
        %v1145 = vrot.slane %v1144, 1
        %v1146 = vadd.f32 %v1144, %v1145
        %v1147 = vadd.f32 %v1126, %v1130
        %v1148 = vrot.slane %v1147, 4
        %v1149 = vadd.f32 %v1147, %v1148
        %v1150 = vrot.slane %v1149, 2
        %v1151 = vadd.f32 %v1149, %v1150
        %v1152 = vrot.slane %v1151, 1
        %v1153 = vadd.f32 %v1151, %v1152
        %v1154 = vadd.f32 %v1128, %v1132
        %v1155 = vrot.slane %v1154, 4
        %v1156 = vadd.f32 %v1154, %v1155
        %v1157 = vrot.slane %v1156, 2
        %v1158 = vadd.f32 %v1156, %v1157
        %v1159 = vrot.slane %v1158, 1
        %v1160 = vadd.f32 %v1158, %v1159
        %v1161 = vrcp.pop %v1139
        %v1162 = vmul.f32 %v1118, %v1161
        %v1163 = vrcp.pop %v1146
        %v1164 = vmul.f32 %v1120, %v1163
        %v1165 = vmul.f32 %v1122, %v1161
        %v1166 = vmul.f32 %v1124, %v1163
        %v1167 = vrcp.pop %v1153
        %v1168 = vmul.f32 %v1126, %v1167
        %v1169 = vrcp.pop %v1160
        %v1170 = vmul.f32 %v1128, %v1169
        %v1171 = vmul.f32 %v1130, %v1167
        %v1172 = vmul.f32 %v1132, %v1169
        %v1173 = vmax.f32 %v1162, %v1165
        %v1174 = vrot.slane %v1173, 4
        %v1175 = vmax.f32 %v1173, %v1174
        %v1176 = vrot.slane %v1175, 2
        %v1177 = vmax.f32 %v1175, %v1176
        %v1178 = vrot.slane %v1177, 1
        %v1179 = vmax.f32 %v1177, %v1178
        %v1180 = vmax.f32 %v1164, %v1166
        %v1181 = vrot.slane %v1180, 4
        %v1182 = vmax.f32 %v1180, %v1181
        %v1183 = vrot.slane %v1182, 2
        %v1184 = vmax.f32 %v1182, %v1183
        %v1185 = vrot.slane %v1184, 1
        %v1186 = vmax.f32 %v1184, %v1185
        %v1187 = vmax.f32 %v1168, %v1171
        %v1188 = vrot.slane %v1187, 4
        %v1189 = vmax.f32 %v1187, %v1188
        %v1190 = vrot.slane %v1189, 2
        %v1191 = vmax.f32 %v1189, %v1190
        %v1192 = vrot.slane %v1191, 1
        %v1193 = vmax.f32 %v1191, %v1192
        %v1194 = vmax.f32 %v1170, %v1172
        %v1195 = vrot.slane %v1194, 4
        %v1196 = vmax.f32 %v1194, %v1195
        %v1197 = vrot.slane %v1196, 2
        %v1198 = vmax.f32 %v1196, %v1197
        %v1199 = vrot.slane %v1198, 1
        %v1200 = vmax.f32 %v1198, %v1199
        %v1201 = vlaneseq
        %v1202 = vshrl.u32 %v1201, 7
        %v1203 = vadd.s32 %v1202, 8
        %vm1204 = vcmp.ge.f32.partialorder %v1162, %v1179
        %vm1205 = vcmp.ge.f32.partialorder %v1164, %v1186
        %vm1206 = vcmp.ge.f32.partialorder %v1165, %v1179
        %vm1207 = vcmp.ge.f32.partialorder %v1166, %v1186
        %vm1208 = vcmp.ge.f32.partialorder %v1168, %v1193
        %vm1209 = vcmp.ge.f32.partialorder %v1170, %v1200
        %vm1210 = vcmp.ge.f32.partialorder %v1171, %v1193
        %vm1211 = vcmp.ge.f32.partialorder %v1172, %v1200
        %v1212 = vsel %vm1204, %v1202, 16
        %v1213 = vsel %vm1205, %v1202, 16
        %v1214 = vsel %vm1206, %v1203, 16
        %v1215 = vsel %vm1207, %v1203, 16
        %v1216 = vsel %vm1208, %v1202, 16
        %v1217 = vsel %vm1209, %v1202, 16
        %v1218 = vsel %vm1210, %v1203, 16
        %v1219 = vsel %vm1211, %v1203, 16
        %vm1220 = vcmp.lt.s32.totalorder %v1212, %v1214
        %v1221 = vsel %vm1220, %v1212, %v1214
        %v1222 = vrot.slane %v1221, 4
        %vm1223 = vcmp.lt.s32.totalorder %v1221, %v1222
        %v1224 = vsel %vm1223, %v1221, %v1222
        %v1225 = vrot.slane %v1224, 2
        %vm1226 = vcmp.lt.s32.totalorder %v1224, %v1225
        %v1227 = vsel %vm1226, %v1224, %v1225
        %v1228 = vrot.slane %v1227, 1
        %vm1229 = vcmp.lt.s32.totalorder %v1227, %v1228
        %v1230 = vsel %vm1229, %v1227, %v1228
        %vm1231 = vcmp.lt.s32.totalorder %v1213, %v1215
        %v1232 = vsel %vm1231, %v1213, %v1215
        %v1233 = vrot.slane %v1232, 4
        %vm1234 = vcmp.lt.s32.totalorder %v1232, %v1233
        %v1235 = vsel %vm1234, %v1232, %v1233
        %v1236 = vrot.slane %v1235, 2
        %vm1237 = vcmp.lt.s32.totalorder %v1235, %v1236
        %v1238 = vsel %vm1237, %v1235, %v1236
        %v1239 = vrot.slane %v1238, 1
        %vm1240 = vcmp.lt.s32.totalorder %v1238, %v1239
        %v1241 = vsel %vm1240, %v1238, %v1239
        %vm1242 = vcmp.lt.s32.totalorder %v1216, %v1218
        %v1243 = vsel %vm1242, %v1216, %v1218
        %v1244 = vrot.slane %v1243, 4
        %vm1245 = vcmp.lt.s32.totalorder %v1243, %v1244
        %v1246 = vsel %vm1245, %v1243, %v1244
        %v1247 = vrot.slane %v1246, 2
        %vm1248 = vcmp.lt.s32.totalorder %v1246, %v1247
        %v1249 = vsel %vm1248, %v1246, %v1247
        %v1250 = vrot.slane %v1249, 1
        %vm1251 = vcmp.lt.s32.totalorder %v1249, %v1250
        %v1252 = vsel %vm1251, %v1249, %v1250
        %vm1253 = vcmp.lt.s32.totalorder %v1217, %v1219
        %v1254 = vsel %vm1253, %v1217, %v1219
        %v1255 = vrot.slane %v1254, 4
        %vm1256 = vcmp.lt.s32.totalorder %v1254, %v1255
        %v1257 = vsel %vm1256, %v1254, %v1255
        %v1258 = vrot.slane %v1257, 2
        %vm1259 = vcmp.lt.s32.totalorder %v1257, %v1258
        %v1260 = vsel %vm1259, %v1257, %v1258
        %v1261 = vrot.slane %v1260, 1
        %vm1262 = vcmp.lt.s32.totalorder %v1260, %v1261
        %v1263 = vsel %vm1262, %v1260, %v1261
        %vm1264 = vcmp.eq.s32.totalorder %v1202, %v1230
        %vm1265 = vcmp.eq.s32.totalorder %v1202, %v1241
        %vm1266 = vcmp.eq.s32.totalorder %v1203, %v1230
        %vm1267 = vcmp.eq.s32.totalorder %v1203, %v1241
        %vm1268 = vcmp.eq.s32.totalorder %v1202, %v1252
        %vm1269 = vcmp.eq.s32.totalorder %v1202, %v1263
        %vm1270 = vcmp.eq.s32.totalorder %v1203, %v1252
        %vm1271 = vcmp.eq.s32.totalorder %v1203, %v1263
        %v1272 = vsel %vm1264, 1, 0
        %v1273 = vsel %vm1265, 1, 0
        %v1274 = vsel %vm1266, 1, 0
        %v1275 = vsel %vm1267, 1, 0
        %v1276 = vsel %vm1268, 1, 0
        %v1277 = vsel %vm1269, 1, 0
        %v1278 = vsel %vm1270, 1, 0
        %v1279 = vsel %vm1271, 1, 0
        %v1280 = vcvt.s32.f32 %v1272
        %v1281 = vcvt.s32.f32 %v1273
        %v1282 = vcvt.s32.f32 %v1274
        %v1283 = vcvt.s32.f32 %v1275
        %v1284 = vcvt.s32.f32 %v1276
        %v1285 = vcvt.s32.f32 %v1277
        %v1286 = vcvt.s32.f32 %v1278
        %v1287 = vcvt.s32.f32 %v1279
        %1288 = vset.pattern.permute.xlu0 2
        %1289 = vperm.xlu0 %1288, %v977
        %v1290 = vpop.permute.xlu0 %1289
        %1292 = vset.pattern.permute.xlu0 2
        %1293 = vperm.xlu0 %1292, %v978
        %v1294 = vpop.permute.xlu0 %1293
        %v1296 = vmul.f32 %v1280, %v1290
        %v1297 = vmul.f32 %v1281, %v1290
        %v1298 = vmul.f32 %v1282, %v1294
        %v1299 = vmul.f32 %v1283, %v1294
        %v1300 = vmul.f32 %v1284, %v1290
        %v1301 = vmul.f32 %v1285, %v1290
        %v1302 = vmul.f32 %v1286, %v1294
        %v1303 = vmul.f32 %v1287, %v1294
        %v1304 = vadd.f32 %v1296, %v1298
        %v1305 = vrot.slane %v1304, 4
        %v1306 = vadd.f32 %v1304, %v1305
        %v1307 = vrot.slane %v1306, 2
        %v1308 = vadd.f32 %v1306, %v1307
        %v1309 = vrot.slane %v1308, 1
        %v1310 = vadd.f32 %v1308, %v1309
        %v1311 = vadd.f32 %v1297, %v1299
        %v1312 = vrot.slane %v1311, 4
        %v1313 = vadd.f32 %v1311, %v1312
        %v1314 = vrot.slane %v1313, 2
        %v1315 = vadd.f32 %v1313, %v1314
        %v1316 = vrot.slane %v1315, 1
        %v1317 = vadd.f32 %v1315, %v1316
        %v1318 = vadd.f32 %v1300, %v1302
        %v1319 = vrot.slane %v1318, 4
        %v1320 = vadd.f32 %v1318, %v1319
        %v1321 = vrot.slane %v1320, 2
        %v1322 = vadd.f32 %v1320, %v1321
        %v1323 = vrot.slane %v1322, 1
        %v1324 = vadd.f32 %v1322, %v1323
        %v1325 = vadd.f32 %v1301, %v1303
        %v1326 = vrot.slane %v1325, 4
        %v1327 = vadd.f32 %v1325, %v1326
        %v1328 = vrot.slane %v1327, 2
        %v1329 = vadd.f32 %v1327, %v1328
        %v1330 = vrot.slane %v1329, 1
        %v1331 = vadd.f32 %v1329, %v1330
        %vm1336 = vcmask 1041409
        %v1337 = vsel %vm1336, %v1324, %v1310
        %v1338 = vsel %vm1336, %v1331, %v1317
        %vm1341 = vcmask 1041408
        %v1342 = vsel %vm1341, %v1337, 0.0
        %v1343 = vsel %vm1341, %v1338, 0.0
        %1344 = vst [vmem:[%s215] sm:$0xff] %v1162
        %1345 = vst [vmem:[%s215 + $0x8] sm:$0xff] %v1164
        %1346 = vst [vmem:[%s215 + $0x10] sm:$0xff] %v1165
        %1347 = vst [vmem:[%s215 + $0x18] sm:$0xff] %v1166
        %1348 = vst [vmem:[%s215 + $0x20] sm:$0xff] %v1168
        %1349 = vst [vmem:[%s215 + $0x28] sm:$0xff] %v1170
        %1350 = vst [vmem:[%s215 + $0x30] sm:$0xff] %v1171
        %1351 = vst [vmem:[%s215 + $0x38] sm:$0xff] %v1172
        %1352 = vst [vmem:[%s215 + $0x40] sm:$0xff] %v1342
        %1353 = vst [vmem:[%s215 + $0x48] sm:$0xff] %v1343
      $region44: #{segmenter_forward.1} parent=35 // pred_fallthru
        _
      %p1354 = scmp.lt.s32.totalorder %s17, 1
      %s1355 = scalar_select %p1354, %s17, 1
      %s1356 = smul.addr %s1355, 8
      %s1357 = scalar_lea.vmem %s4, %s1356
      %p1358 = scmp.lt.s32.totalorder %s17, 1
      %s1359 = scalar_select %p1358, %s17, 1
      %s1360 = smul.addr %s1359, 10
      %s1361 = smul.addr %s1360, 8
      %s1362 = scalar_lea.vmem %s5, %s1361
      // Predicated region
      $region45: #{segmenter_forward.1} parent=35 // pred_check
        %p1363 = pneg %p119
      $region46: #{segmenter_forward.1} parent=35 // pred_check_branch
        %1365 = sbr.rel (%p1363) target = $region48
      $region47: #{segmenter_forward.1} parent=35 // pred_region
        _
      $region48: #{segmenter_forward.1} parent=35 // pred_fallthru
        _
      // Predicated region
      $region49: #{segmenter_forward.1} parent=35 // pred_check
        %p1366 = pneg %p145
      $region50: #{segmenter_forward.1} parent=35 // pred_check_branch
        %1368 = sbr.rel (%p1366) target = $region52
      $region51: #{segmenter_forward.1} parent=35 // pred_region
        _
      $region52: #{segmenter_forward.1} parent=35 // pred_fallthru
        _
    $region36: #{segmenter_forward.1} parent=5 // pred_fallthru
      _
    %p1369 = scmp.le.s32.totalorder 2, %s12
    // Predicated region
    $region53: #{segmenter_forward.1} parent=5 // pred_check
      %p1370 = pneg %p1369
    $region54: #{segmenter_forward.1} parent=5 // pred_check_branch
      %1372 = sbr.rel (%p1370) target = $region56
    $region55: #{segmenter_forward.1} parent=5 // pred_region
      %s1373 = ssub.s32 %s12, 2
      // Predicated region
      $region57: #{segmenter_forward.1} parent=55 // pred_check
        %p1374 = pneg %p125
      $region58: #{segmenter_forward.1} parent=55 // pred_check_branch
        %1376 = sbr.rel (%p1374) target = $region60
      $region59: #{segmenter_forward.1} parent=55 // pred_region
        %p1377 = scmp.lt.s32.totalorder %s18, 1
        %s1378 = scalar_select %p1377, %s18, 1
        %s1379 = smul.addr %s1378, 8
        %s1380 = scalar_lea.vmem %s4, %s1379
      $region60: #{segmenter_forward.1} parent=55 // pred_fallthru
        _
      // Predicated region
      $region61: #{segmenter_forward.1} parent=55 // pred_check
        %p1381 = pneg %p151
      $region62: #{segmenter_forward.1} parent=55 // pred_check_branch
        %1383 = sbr.rel (%p1381) target = $region64
      $region63: #{segmenter_forward.1} parent=55 // pred_region
        %p1384 = scmp.lt.s32.totalorder %s18, 1
        %s1385 = scalar_select %p1384, %s18, 1
        %s1386 = smul.addr %s1385, 10
        %s1387 = smul.addr %s1386, 8
        %s1388 = scalar_lea.vmem %s5, %s1387
      $region64: #{segmenter_forward.1} parent=55 // pred_fallthru
        _
    $region56: #{segmenter_forward.1} parent=5 // pred_fallthru
      _
  $region6: #{segmenter_forward.1} parent=0 // loop_footer
    %s16 = sadd.s32 1, %s12
  $region7: #{segmenter_forward.1} parent=0 // loop_footer_branch
    %11 = sbr.rel target = $region3
  $region8: #{segmenter_forward.1} parent=0 // loop_exit
    _

</llo_original>
